<compile_context>
chip_gen: v7x
topology: tpu7x:2x2x1
jax: 0.10.0
libtpu: 0.0.40
codegen_flags: <defaults>
</compile_context>

<pallas_src>
import jax
import jax.numpy as jnp
from jax.experimental import pallas as pl
from jax.experimental.pallas import tpu as pltpu


def _vim_pretext_kernel(x_ref, w0_ref, b0_ref, w12_ref, b12_ref,
                        mask_ref, feat_ref, enc_ref):
    D = enc_ref.shape[-1]

    x = x_ref[...]                                   # (tile_b, D) bf16

    # fc0: Linear + ReLU  -> encoder (f32 accumulate on the MXU)
    enc = jnp.dot(x, w0_ref[...], preferred_element_type=jnp.float32)
    enc = jnp.maximum(enc + b0_ref[...], 0.0)
    enc_ref[...] = enc.astype(enc_ref.dtype)

    # fc1 | fc2 fused: one (tile_b, 2D) matmul fills the 256-wide MXU, then
    # split the lane-aligned halves and apply sigmoid.
    z = jnp.dot(enc.astype(w12_ref.dtype), w12_ref[...],
                preferred_element_type=jnp.float32) + b12_ref[...]
    z = jax.nn.sigmoid(z)
    mask_ref[...] = z[:, :D].astype(mask_ref.dtype)
    feat_ref[...] = z[:, D:].astype(feat_ref.dtype)


def _pick_tile_b(B, max_tile=256):
    """Largest batch tile (multiple of 8, <= max_tile) dividing B, preferring
    at least 2 grid steps so both v7x TensorCores are used."""
    if B % 8 != 0 or B <= 8:
        return B  # tiny/odd batch: one full-batch tile (valid: equals array dim)
    t = min(max_tile, B)
    t -= t % 8
    while B % t != 0:
        t -= 8
    if B // t == 1 and B >= 16:
        t2 = (t // 2) - ((t // 2) % 8)
        while t2 >= 8 and B % t2 != 0:
            t2 -= 8
        if t2 >= 8:
            t = t2
    return t


def prepare_params(params_f32):
    """Cast weights to bf16 and fuse the two sigmoid heads into one weight."""
    return {
        "w0": params_f32["w0"].astype(jnp.bfloat16),                       # (D, D)
        "b0": params_f32["b0"].astype(jnp.float32),                        # (1, D)
        "w12": jnp.concatenate([params_f32["w1"], params_f32["w2"]],
                               axis=1).astype(jnp.bfloat16),               # (D, 2D)
        "b12": jnp.concatenate([params_f32["b1"], params_f32["b2"]],
                               axis=1).astype(jnp.float32),                # (1, 2D)
    }


def vim_pretext_forward(x, params, *, tile_b=None):
    """x: (B, D) float32. params: output of prepare_params().

    Returns (mask, feature, encoder), each (B, D) float32.
    """
    B, D = x.shape
    if tile_b is None:
        tile_b = _pick_tile_b(B)
    assert B % tile_b == 0

    # bf16 activations into the kernel: halves the input DMA bytes.
    x_bf16 = x.astype(jnp.bfloat16)

    w0, b0 = params["w0"], params["b0"]
    w12, b12 = params["w12"], params["b12"]

    in_specs = [
        pl.BlockSpec((tile_b, D), lambda i: (i, 0)),   # x tile
        pl.BlockSpec((D, D), lambda i: (0, 0)),        # w0 (resident)
        pl.BlockSpec((1, D), lambda i: (0, 0)),        # b0
        pl.BlockSpec((D, 2 * D), lambda i: (0, 0)),    # [w1 | w2] (resident)
        pl.BlockSpec((1, 2 * D), lambda i: (0, 0)),    # [b1 | b2]
    ]
    out_spec = pl.BlockSpec((tile_b, D), lambda i: (i, 0))
    out_shape = (
        jax.ShapeDtypeStruct((B, D), jnp.float32),     # mask
        jax.ShapeDtypeStruct((B, D), jnp.float32),     # feature
        jax.ShapeDtypeStruct((B, D), jnp.float32),     # encoder
    )

    # Rough VMEM working-set estimate (double-buffered I/O, 2 copies of the
    # resident weights).  Only raise the scoped limit when we actually need to.
    weight_bytes = 2 * (D * D * 2 + D * 2 * D * 2 + 3 * D * 4)
    io_bytes = 2 * (tile_b * D * 2) + 2 * 3 * (tile_b * D * 4)
    est = weight_bytes + io_bytes + (4 << 20)
    vmem_limit = int(est) if est > (24 << 20) else None

    mask, feature, encoder = pl.pallas_call(
        _vim_pretext_kernel,
        out_shape=out_shape,
        grid_spec=pltpu.PrefetchScalarGridSpec(
            num_scalar_prefetch=0,
            grid=(B // tile_b,),
            in_specs=in_specs,
            out_specs=[out_spec, out_spec, out_spec],
        ),
        compiler_params=pltpu.CompilerParams(
            dimension_semantics=("parallel",),
            vmem_limit_bytes=vmem_limit,
        ),
    )(x_bf16, w0, b0, w12, b12)

    return mask, feature, encoder


def init_params(dim, key):
    """Deterministic init matching PyTorch Linear's U(-1/sqrt(in), 1/sqrt(in)).

    Weights stored as (in, out) = transpose of PyTorch's (out, in)."""
    keys = jax.random.split(key, 6)
    bound = 1.0 / jnp.sqrt(jnp.float32(dim))

    def lin(kw, kb):
        w = jax.random.uniform(kw, (dim, dim), jnp.float32, -bound, bound)
        b = jax.random.uniform(kb, (1, dim), jnp.float32, -bound, bound)
        return w, b

    w0, b0 = lin(keys[0], keys[1])
    w1, b1 = lin(keys[2], keys[3])
    w2, b2 = lin(keys[4], keys[5])
    return {"w0": w0, "b0": b0, "w1": w1, "b1": b1, "w2": w2, "b2": b2}


def _reference_forward(x, params_f32):
    """Plain-JAX reference using the same bf16 weights / f32 accumulation."""
    xb = x.astype(jnp.bfloat16)
    w0 = params_f32["w0"].astype(jnp.bfloat16)
    w1 = params_f32["w1"].astype(jnp.bfloat16)
    w2 = params_f32["w2"].astype(jnp.bfloat16)
    enc = jnp.maximum(
        jnp.dot(xb, w0, preferred_element_type=jnp.float32) + params_f32["b0"], 0.0)
    encb = enc.astype(jnp.bfloat16)
    mask = jax.nn.sigmoid(
        jnp.dot(encb, w1, preferred_element_type=jnp.float32) + params_f32["b1"])
    feat = jax.nn.sigmoid(
        jnp.dot(encb, w2, preferred_element_type=jnp.float32) + params_f32["b2"])
    return mask, feat, enc


if __name__ == "__main__":
    # Small but non-degenerate shapes: multi-step grid (>=2) so pipelining and
    # v7x dual-TC sharding are exercised.
    B, DIM = 512, 256
    key = jax.random.PRNGKey(0)
    k_x, k_p = jax.random.split(key)

    x = jax.random.normal(k_x, (B, DIM), dtype=jnp.float32)
    params_f32 = init_params(DIM, k_p)
    params = prepare_params(params_f32)

    mask, feature, encoder = vim_pretext_forward(x, params)
    jax.block_until_ready((mask, feature, encoder))

    # Correctness check against a plain-JAX reference of the same bf16 math.
    ref_mask, ref_feat, ref_enc = _reference_forward(x, params_f32)
    assert jnp.allclose(mask, ref_mask, atol=2e-2, rtol=2e-2)
    assert jnp.allclose(feature, ref_feat, atol=2e-2, rtol=2e-2)
    assert jnp.allclose(encoder, ref_enc, atol=2e-2, rtol=2e-2)

    print("KERNEL_OK")
</pallas_src>

<mosaic_0001>
module attributes {stable_mosaic.version = 11 : i64} {
  func.func @_vim_pretext_kernel(%arg0: i32, %arg1: memref<256x256xbf16, #tpu.memory_space<vmem>>, %arg2: memref<256x256xbf16, #tpu.memory_space<vmem>>, %arg3: memref<1x256xf32, #tpu.memory_space<vmem>>, %arg4: memref<256x512xbf16, #tpu.memory_space<vmem>>, %arg5: memref<1x512xf32, #tpu.memory_space<vmem>>, %arg6: memref<256x256xf32, #tpu.memory_space<vmem>>, %arg7: memref<256x256xf32, #tpu.memory_space<vmem>>, %arg8: memref<256x256xf32, #tpu.memory_space<vmem>>) attributes {dimension_semantics = [#tpu.dimension_semantics<parallel>], iteration_bounds = array<i64: 2>, scalar_prefetch = 0 : i64, scratch_operands = 0 : i64, tpu.core_type = #tpu.core_type<tc>, window_params = [{transform_indices = @transform_0, window_bounds = array<i64: 256, 256>}, {pipeline_mode = #tpu.pipeline_mode<synchronous>, transform_indices = @transform_1, window_bounds = array<i64: 256, 256>}, {pipeline_mode = #tpu.pipeline_mode<synchronous>, transform_indices = @transform_2, window_bounds = array<i64: 1, 256>}, {pipeline_mode = #tpu.pipeline_mode<synchronous>, transform_indices = @transform_3, window_bounds = array<i64: 256, 512>}, {pipeline_mode = #tpu.pipeline_mode<synchronous>, transform_indices = @transform_4, window_bounds = array<i64: 1, 512>}, {transform_indices = @transform_5, window_bounds = array<i64: 256, 256>}, {transform_indices = @transform_6, window_bounds = array<i64: 256, 256>}, {transform_indices = @transform_7, window_bounds = array<i64: 256, 256>}]} {
    %c0 = arith.constant 0 : index
    %c0_0 = arith.constant 0 : index
    %0 = vector.load %arg1[%c0, %c0_0] : memref<256x256xbf16, #tpu.memory_space<vmem>>, vector<256x256xbf16>
    %c0_1 = arith.constant 0 : index
    %c0_2 = arith.constant 0 : index
    %1 = vector.load %arg2[%c0_1, %c0_2] : memref<256x256xbf16, #tpu.memory_space<vmem>>, vector<256x256xbf16>
    %cst = arith.constant dense<0.000000e+00> : vector<256x256xf32>
    %2 = tpu.matmul %0, %1, %cst {dimension_numbers = #tpu.dot_dimension_numbers<[1], [0], [0], [1], [0, 0, 1, 1], [], []>} : vector<256x256xbf16>, vector<256x256xbf16>, vector<256x256xf32> -> vector<256x256xf32>
    %c0_3 = arith.constant 0 : index
    %c0_4 = arith.constant 0 : index
    %3 = vector.load %arg3[%c0_3, %c0_4] : memref<1x256xf32, #tpu.memory_space<vmem>>, vector<1x256xf32>
    %4 = vector.broadcast %3 : vector<1x256xf32> to vector<256x256xf32>
    %5 = arith.addf %2, %4 : vector<256x256xf32>
    %cst_5 = arith.constant 0.000000e+00 : f32
    %6 = vector.broadcast %cst_5 : f32 to vector<256x256xf32>
    %7 = arith.maximumf %5, %6 : vector<256x256xf32>
    %c0_6 = arith.constant 0 : index
    %c0_7 = arith.constant 0 : index
    %8 = vector.load %arg8[%c0_6, %c0_7] : memref<256x256xf32, #tpu.memory_space<vmem>>, vector<256x256xf32>
    tpu.vector_store %arg8[%c0_6, %c0_7], %7 {strides = array<i32>} : memref<256x256xf32, #tpu.memory_space<vmem>>, vector<256x256xf32>,
    %9 = arith.truncf %7 : vector<256x256xf32> to vector<256x256xbf16>
    %c0_8 = arith.constant 0 : index
    %c0_9 = arith.constant 0 : index
    %10 = vector.load %arg4[%c0_8, %c0_9] : memref<256x512xbf16, #tpu.memory_space<vmem>>, vector<256x512xbf16>
    %cst_10 = arith.constant dense<0.000000e+00> : vector<256x512xf32>
    %11 = tpu.matmul %9, %10, %cst_10 {dimension_numbers = #tpu.dot_dimension_numbers<[1], [0], [0], [1], [0, 0, 1, 1], [], []>} : vector<256x256xbf16>, vector<256x512xbf16>, vector<256x512xf32> -> vector<256x512xf32>
    %c0_11 = arith.constant 0 : index
    %c0_12 = arith.constant 0 : index
    %12 = vector.load %arg5[%c0_11, %c0_12] : memref<1x512xf32, #tpu.memory_space<vmem>>, vector<1x512xf32>
    %13 = vector.broadcast %12 : vector<1x512xf32> to vector<256x512xf32>
    %14 = arith.addf %11, %13 : vector<256x512xf32>
    %15 = arith.negf %14 : vector<256x512xf32>
    %16 = math.exp %15 : vector<256x512xf32>
    %cst_13 = arith.constant 1.000000e+00 : f32
    %17 = vector.broadcast %cst_13 : f32 to vector<256x512xf32>
    %18 = arith.addf %17, %16 : vector<256x512xf32>
    %19 = arith.divf %17, %18 : vector<256x512xf32>
    %20 = vector.extract_strided_slice %19 {offsets = [0, 0], sizes = [256, 256], strides = [1, 1]} : vector<256x512xf32> to vector<256x256xf32>
    %c0_14 = arith.constant 0 : index
    %c0_15 = arith.constant 0 : index
    %21 = vector.load %arg6[%c0_14, %c0_15] : memref<256x256xf32, #tpu.memory_space<vmem>>, vector<256x256xf32>
    tpu.vector_store %arg6[%c0_14, %c0_15], %20 {strides = array<i32>} : memref<256x256xf32, #tpu.memory_space<vmem>>, vector<256x256xf32>,
    %22 = vector.extract_strided_slice %19 {offsets = [0, 256], sizes = [256, 256], strides = [1, 1]} : vector<256x512xf32> to vector<256x256xf32>
    %c0_16 = arith.constant 0 : index
    %c0_17 = arith.constant 0 : index
    %23 = vector.load %arg7[%c0_16, %c0_17] : memref<256x256xf32, #tpu.memory_space<vmem>>, vector<256x256xf32>
    tpu.vector_store %arg7[%c0_16, %c0_17], %22 {strides = array<i32>} : memref<256x256xf32, #tpu.memory_space<vmem>>, vector<256x256xf32>,
    return
  }
  func.func @transform_0(%arg0: i32) -> (i32, i32) {
    %c0_i32 = arith.constant 0 : i32
    %c0_i32_0 = arith.constant 0 : i32
    return %arg0, %c0_i32 : i32, i32
  }
  func.func @transform_1(%arg0: i32) -> (i32, i32) {
    %c0_i32 = arith.constant 0 : i32
    %c0_i32_0 = arith.constant 0 : i32
    %c0_i32_1 = arith.constant 0 : i32
    return %c0_i32, %c0_i32_0 : i32, i32
  }
  func.func @transform_2(%arg0: i32) -> (i32, i32) {
    %c0_i32 = arith.constant 0 : i32
    %c0_i32_0 = arith.constant 0 : i32
    %c0_i32_1 = arith.constant 0 : i32
    return %c0_i32, %c0_i32_0 : i32, i32
  }
  func.func @transform_3(%arg0: i32) -> (i32, i32) {
    %c0_i32 = arith.constant 0 : i32
    %c0_i32_0 = arith.constant 0 : i32
    %c0_i32_1 = arith.constant 0 : i32
    return %c0_i32, %c0_i32_0 : i32, i32
  }
  func.func @transform_4(%arg0: i32) -> (i32, i32) {
    %c0_i32 = arith.constant 0 : i32
    %c0_i32_0 = arith.constant 0 : i32
    %c0_i32_1 = arith.constant 0 : i32
    return %c0_i32, %c0_i32_0 : i32, i32
  }
  func.func @transform_5(%arg0: i32) -> (i32, i32) {
    %c0_i32 = arith.constant 0 : i32
    %c0_i32_0 = arith.constant 0 : i32
    return %arg0, %c0_i32 : i32, i32
  }
  func.func @transform_6(%arg0: i32) -> (i32, i32) {
    %c0_i32 = arith.constant 0 : i32
    %c0_i32_0 = arith.constant 0 : i32
    return %arg0, %c0_i32 : i32, i32
  }
  func.func @transform_7(%arg0: i32) -> (i32, i32) {
    %c0_i32 = arith.constant 0 : i32
    %c0_i32_0 = arith.constant 0 : i32
    return %arg0, %c0_i32 : i32, i32
  }
}

</mosaic_0001>

<llo_original>
// kernel: tpu_custom_call.1
$region0: #{tpu_custom_call.1}
  #allocation0 [shape = 'u32[]', space=smem, size = 0x4, offset = 0x4, fixed_abs, tag = 'smem constant byte address 0x4 - core index']
  #allocation1 [shape = 'u32[144,128]{1,0:T(1,128)}', space=vmem, size = 0x12000, scoped, tag = 'internal scratch']
  %s0 = inlined_call_operand.hbm [shape: bf16[512,256], index: 0, kind: input, shape index: {}]
  %s1 = inlined_call_operand.hbm [shape: bf16[256,256], index: 1, kind: input, shape index: {}]
  %s2 = inlined_call_operand.vmem [shape: f32[1,256], index: 2, kind: input, shape index: {}]
  %s3 = inlined_call_operand.hbm [shape: bf16[256,512], index: 3, kind: input, shape index: {}]
  %s4 = inlined_call_operand.vmem [shape: f32[1,512], index: 4, kind: input, shape index: {}]
  %s5 = inlined_call_operand.hbm [shape: f32[512,256], index: 5, kind: output, shape index: {0}]
  %s6 = inlined_call_operand.hbm [shape: f32[512,256], index: 6, kind: output, shape index: {1}]
  %s7 = inlined_call_operand.hbm [shape: f32[512,256], index: 7, kind: output, shape index: {2}]
  %8 = xla_tuple %s5, %s6, %s7
  %s9 = sld [smem:[#allocation0]]
  $region81: #{tpu_custom_call.1} parent=0
    _
  %s11 = ssub.s32 1, %s9
  %s12 = scalar_select 0, %s11, %s9
  $region1: #{tpu_custom_call.1} parent=0
    #allocation2 [shape = 'u8[262144]{0}', space=vmem, size = 0x40000, scoped, tag = 'input window, operand 0']
    #allocation3 [shape = 's32[2]{0}', space=sflag, size = 0x8, scoped, tag = 'scoped memory for tpu_custom_call.1']
    #allocation4 [shape = 's32[2]{0}', space=sflag, size = 0x8, scoped, tag = 'scoped memory for tpu_custom_call.1']
    #allocation5 [shape = 'u8[131072]{0}', space=vmem, size = 0x20000, scoped, tag = 'input window, operand 1, single buffered']
    #allocation6 [shape = 's32[1]{0}', space=sflag, size = 0x4, scoped, tag = 'scoped memory for tpu_custom_call.1']
    #allocation7 [shape = 'u8[262144]{0}', space=vmem, size = 0x40000, scoped, tag = 'input window, operand 3, single buffered']
    #allocation8 [shape = 'u8[524288]{0}', space=vmem, size = 0x80000, scoped, tag = 'output window, operand 0']
    #allocation9 [shape = 'u8[524288]{0}', space=vmem, size = 0x80000, scoped, tag = 'output window, operand 1']
    #allocation10 [shape = 's32[2]{0}', space=sflag, size = 0x8, scoped, tag = 'scoped memory for tpu_custom_call.1']
    #allocation11 [shape = 'u8[524288]{0}', space=vmem, size = 0x80000, scoped, tag = 'output window, operand 2']
    %13 = vsyncpa [#allocation3], 0
    %s14 = scalar_lea.sflag [#allocation3], 1
    %15 = vsyncpa %s14, 0
    %16 = vsyncpa [#allocation6], 0
    %17 = vsyncpa [#allocation4], 0
    %s18 = scalar_lea.sflag [#allocation4], 1
    %19 = vsyncpa %s18, 0
    %20 = vsyncpa [#allocation10], 0
    %s21 = scalar_lea.sflag [#allocation10], 1
    %22 = vsyncpa %s21, 0
    loop: start=0, step=1, limit=4
    $region2: #{tpu_custom_call.1} parent=1 // loop_pre_header
      _
    $region3: #{tpu_custom_call.1} parent=1 // loop_header
      %s24 = sphi 0, %s28
      %p25 = scmp.ge.s32.totalorder %s24, 4
      %s34 = sphi 0, %s36
      %s37 = sphi 0, %s34
      %s38 = sphi 0, %s37
      %s54 = sphi 0, %s38
      %s58 = sphi 0, %s58
      %s60 = sphi 0, %s58
      %s61 = sphi 0, %s60
      %s75 = sphi 0, %s61
      %s79 = sphi 0, %s79
      %s81 = sphi 0, %s79
      %s82 = sphi 0, %s81
      %s96 = sphi 0, %s82
      %s100 = sphi 0, %s100
      %s102 = sphi 0, %s100
      %s103 = sphi 0, %s102
      %s117 = sphi 0, %s103
      %s121 = sphi 0, %s121
      %s123 = sphi 0, %s121
      %s124 = sphi 0, %s123
      %s138 = sphi 0, %s124
      %s144 = sphi 0, %s146
      %s147 = sphi 0, %s144
      %s148 = sphi 0, %s147
      %s164 = sphi 0, %s148
      %s170 = sphi 0, %s172
      %s173 = sphi 0, %s170
      %s174 = sphi 0, %s173
      %s190 = sphi 0, %s174
      %s196 = sphi 0, %s198
      %s199 = sphi 0, %s196
      %s200 = sphi 0, %s199
      %s216 = sphi 0, %s200
    $region4: #{tpu_custom_call.1} parent=1 // loop_header_branch
      %27 = sbr.rel (%p25) target = $region8
    $region5: #{tpu_custom_call.1} parent=1 // loop_body
      %s29 = ssub.s32 %s24, 1
      %s30 = ssub.s32 %s24, 2
      %s31 = sadd.s32 %s24, 1
      %s32 = ssub.s32 %s24, %s31
      %p33 = scmp.eq.s32.totalorder %s32, 0
      %s35 = sadd.s32 %s34, 1
      %s36 = scalar_select %p33, %s34, %s35
      %p39 = pneg %p33
      %p40 = scmp.eq.s32.totalorder %s24, 1
      %p41 = por %p39, %p40
      %p42 = scmp.ne.s32.totalorder %s34, %s37
      %p43 = scmp.eq.s32.totalorder %s24, 0
      %p44 = por %p42, %p43
      %p45 = scmp.ne.s32.totalorder %s34, %s37
      %p46 = scmp.eq.s32.totalorder %s29, 1
      %p47 = por %p45, %p46
      %p48 = scmp.ne.s32.totalorder %s37, %s38
      %p49 = scmp.eq.s32.totalorder %s29, 0
      %p50 = por %p48, %p49
      %p51 = scmp.ne.s32.totalorder %s37, %s38
      %p52 = scmp.eq.s32.totalorder %s30, 1
      %p53 = por %p51, %p52
      %p55 = scmp.ne.s32.totalorder %s38, %s54
      %p56 = scmp.eq.s32.totalorder %s30, 0
      %p57 = por %p55, %p56
      %s59 = sadd.s32 %s58, 1
      %p62 = scmp.eq.s32.totalorder %s24, 1
      %p63 = scmp.ne.s32.totalorder %s58, %s60
      %p64 = scmp.eq.s32.totalorder %s24, 0
      %p65 = por %p63, %p64
      %p66 = scmp.ne.s32.totalorder %s58, %s60
      %p67 = scmp.eq.s32.totalorder %s29, 1
      %p68 = por %p66, %p67
      %p69 = scmp.ne.s32.totalorder %s60, %s61
      %p70 = scmp.eq.s32.totalorder %s29, 0
      %p71 = por %p69, %p70
      %p72 = scmp.ne.s32.totalorder %s60, %s61
      %p73 = scmp.eq.s32.totalorder %s30, 1
      %p74 = por %p72, %p73
      %p76 = scmp.ne.s32.totalorder %s61, %s75
      %p77 = scmp.eq.s32.totalorder %s30, 0
      %p78 = por %p76, %p77
      %s80 = sadd.s32 %s79, 1
      %p83 = scmp.eq.s32.totalorder %s24, 1
      %p84 = scmp.ne.s32.totalorder %s79, %s81
      %p85 = scmp.eq.s32.totalorder %s24, 0
      %p86 = por %p84, %p85
      %p87 = scmp.ne.s32.totalorder %s79, %s81
      %p88 = scmp.eq.s32.totalorder %s29, 1
      %p89 = por %p87, %p88
      %p90 = scmp.ne.s32.totalorder %s81, %s82
      %p91 = scmp.eq.s32.totalorder %s29, 0
      %p92 = por %p90, %p91
      %p93 = scmp.ne.s32.totalorder %s81, %s82
      %p94 = scmp.eq.s32.totalorder %s30, 1
      %p95 = por %p93, %p94
      %p97 = scmp.ne.s32.totalorder %s82, %s96
      %p98 = scmp.eq.s32.totalorder %s30, 0
      %p99 = por %p97, %p98
      %s101 = sadd.s32 %s100, 1
      %p104 = scmp.eq.s32.totalorder %s24, 1
      %p105 = scmp.ne.s32.totalorder %s100, %s102
      %p106 = scmp.eq.s32.totalorder %s24, 0
      %p107 = por %p105, %p106
      %p108 = scmp.ne.s32.totalorder %s100, %s102
      %p109 = scmp.eq.s32.totalorder %s29, 1
      %p110 = por %p108, %p109
      %p111 = scmp.ne.s32.totalorder %s102, %s103
      %p112 = scmp.eq.s32.totalorder %s29, 0
      %p113 = por %p111, %p112
      %p114 = scmp.ne.s32.totalorder %s102, %s103
      %p115 = scmp.eq.s32.totalorder %s30, 1
      %p116 = por %p114, %p115
      %p118 = scmp.ne.s32.totalorder %s103, %s117
      %p119 = scmp.eq.s32.totalorder %s30, 0
      %p120 = por %p118, %p119
      %s122 = sadd.s32 %s121, 1
      %p125 = scmp.eq.s32.totalorder %s24, 1
      %p126 = scmp.ne.s32.totalorder %s121, %s123
      %p127 = scmp.eq.s32.totalorder %s24, 0
      %p128 = por %p126, %p127
      %p129 = scmp.ne.s32.totalorder %s121, %s123
      %p130 = scmp.eq.s32.totalorder %s29, 1
      %p131 = por %p129, %p130
      %p132 = scmp.ne.s32.totalorder %s123, %s124
      %p133 = scmp.eq.s32.totalorder %s29, 0
      %p134 = por %p132, %p133
      %p135 = scmp.ne.s32.totalorder %s123, %s124
      %p136 = scmp.eq.s32.totalorder %s30, 1
      %p137 = por %p135, %p136
      %p139 = scmp.ne.s32.totalorder %s124, %s138
      %p140 = scmp.eq.s32.totalorder %s30, 0
      %p141 = por %p139, %p140
      %s142 = ssub.s32 %s24, %s31
      %p143 = scmp.eq.s32.totalorder %s142, 0
      %s145 = sadd.s32 %s144, 1
      %s146 = scalar_select %p143, %s144, %s145
      %p149 = pneg %p143
      %p150 = scmp.eq.s32.totalorder %s24, 1
      %p151 = por %p149, %p150
      %p152 = scmp.ne.s32.totalorder %s144, %s147
      %p153 = scmp.eq.s32.totalorder %s24, 0
      %p154 = por %p152, %p153
      %p155 = scmp.ne.s32.totalorder %s144, %s147
      %p156 = scmp.eq.s32.totalorder %s29, 1
      %p157 = por %p155, %p156
      %p158 = scmp.ne.s32.totalorder %s147, %s148
      %p159 = scmp.eq.s32.totalorder %s29, 0
      %p160 = por %p158, %p159
      %p161 = scmp.ne.s32.totalorder %s147, %s148
      %p162 = scmp.eq.s32.totalorder %s30, 1
      %p163 = por %p161, %p162
      %p165 = scmp.ne.s32.totalorder %s148, %s164
      %p166 = scmp.eq.s32.totalorder %s30, 0
      %p167 = por %p165, %p166
      %s168 = ssub.s32 %s24, %s31
      %p169 = scmp.eq.s32.totalorder %s168, 0
      %s171 = sadd.s32 %s170, 1
      %s172 = scalar_select %p169, %s170, %s171
      %p175 = pneg %p169
      %p176 = scmp.eq.s32.totalorder %s24, 1
      %p177 = por %p175, %p176
      %p178 = scmp.ne.s32.totalorder %s170, %s173
      %p179 = scmp.eq.s32.totalorder %s24, 0
      %p180 = por %p178, %p179
      %p181 = scmp.ne.s32.totalorder %s170, %s173
      %p182 = scmp.eq.s32.totalorder %s29, 1
      %p183 = por %p181, %p182
      %p184 = scmp.ne.s32.totalorder %s173, %s174
      %p185 = scmp.eq.s32.totalorder %s29, 0
      %p186 = por %p184, %p185
      %p187 = scmp.ne.s32.totalorder %s173, %s174
      %p188 = scmp.eq.s32.totalorder %s30, 1
      %p189 = por %p187, %p188
      %p191 = scmp.ne.s32.totalorder %s174, %s190
      %p192 = scmp.eq.s32.totalorder %s30, 0
      %p193 = por %p191, %p192
      %s194 = ssub.s32 %s24, %s31
      %p195 = scmp.eq.s32.totalorder %s194, 0
      %s197 = sadd.s32 %s196, 1
      %s198 = scalar_select %p195, %s196, %s197
      %p201 = pneg %p195
      %p202 = scmp.eq.s32.totalorder %s24, 1
      %p203 = por %p201, %p202
      %p204 = scmp.ne.s32.totalorder %s196, %s199
      %p205 = scmp.eq.s32.totalorder %s24, 0
      %p206 = por %p204, %p205
      %p207 = scmp.ne.s32.totalorder %s196, %s199
      %p208 = scmp.eq.s32.totalorder %s29, 1
      %p209 = por %p207, %p208
      %p210 = scmp.ne.s32.totalorder %s199, %s200
      %p211 = scmp.eq.s32.totalorder %s29, 0
      %p212 = por %p210, %p211
      %p213 = scmp.ne.s32.totalorder %s199, %s200
      %p214 = scmp.eq.s32.totalorder %s30, 1
      %p215 = por %p213, %p214
      %p217 = scmp.ne.s32.totalorder %s200, %s216
      %p218 = scmp.eq.s32.totalorder %s30, 0
      %p219 = por %p217, %p218
      %p220 = scmp.le.s32.totalorder 1, %s24
      %p221 = scmp.lt.s32.totalorder %s24, 3
      %p222 = pnand %p220, %p221
      %p223 = pneg %p222
      // Predicated region
      $region9: #{tpu_custom_call.1} parent=5 // pred_check
        _
      $region10: #{tpu_custom_call.1} parent=5 // pred_check_branch
        %225 = sbr.rel (%p222) target = $region12
      $region11: #{tpu_custom_call.1} parent=5 // pred_region
        %s226 = ssub.s32 %s24, 1
        // Predicated region
        $region13: #{tpu_custom_call.1} parent=11 // pred_check
          %p227 = pneg %p71
        $region14: #{tpu_custom_call.1} parent=11 // pred_check_branch
          %229 = sbr.rel (%p227) target = $region16
        $region15: #{tpu_custom_call.1} parent=11 // pred_region
          %s231 = ssub.s32 4096, 4096
          %232 = vsyncadd [#allocation6], %s231
          %s233 = sshll.u32 [#allocation5], 4
          %s234 = int_to_ptr.vmem [resolvable:$true] %s233
          %239 = dma.hbm_to_vmem [thread:$0]  %s1, 4096, %s234, [#allocation6], 128, 128, 8
        $region16: #{tpu_custom_call.1} parent=11 // pred_fallthru
          _
        // Predicated region
        $region17: #{tpu_custom_call.1} parent=11 // pred_check
          %p240 = pneg %p92
        $region18: #{tpu_custom_call.1} parent=11 // pred_check_branch
          %242 = sbr.rel (%p240) target = $region20
        $region19: #{tpu_custom_call.1} parent=11 // pred_region
          _
        $region20: #{tpu_custom_call.1} parent=11 // pred_fallthru
          _
        // Predicated region
        $region21: #{tpu_custom_call.1} parent=11 // pred_check
          %p243 = pneg %p113
        $region22: #{tpu_custom_call.1} parent=11 // pred_check_branch
          %245 = sbr.rel (%p243) target = $region24
        $region23: #{tpu_custom_call.1} parent=11 // pred_region
          %s247 = ssub.s32 8192, 8192
          %248 = vsyncadd [#allocation6], %s247
          %s249 = sshll.u32 [#allocation7], 4
          %s250 = int_to_ptr.vmem [resolvable:$true] %s249
          %255 = dma.hbm_to_vmem [thread:$0]  %s3, 8192, %s250, [#allocation6], 256, 256, 16
        $region24: #{tpu_custom_call.1} parent=11 // pred_fallthru
          _
        // Predicated region
        $region25: #{tpu_custom_call.1} parent=11 // pred_check
          %p256 = pneg %p134
        $region26: #{tpu_custom_call.1} parent=11 // pred_check_branch
          %258 = sbr.rel (%p256) target = $region28
        $region27: #{tpu_custom_call.1} parent=11 // pred_region
          _
        $region28: #{tpu_custom_call.1} parent=11 // pred_fallthru
          _
      $region12: #{tpu_custom_call.1} parent=5 // pred_fallthru
        _
      %p259 = scmp.lt.s32.totalorder %s24, 2
      // Predicated region
      $region29: #{tpu_custom_call.1} parent=5 // pred_check
        %p260 = pneg %p259
      $region30: #{tpu_custom_call.1} parent=5 // pred_check_branch
        %262 = sbr.rel (%p260) target = $region32
      $region31: #{tpu_custom_call.1} parent=5 // pred_region
        // Predicated region
        $region33: #{tpu_custom_call.1} parent=31 // pred_check
          %p263 = pneg %p44
        $region34: #{tpu_custom_call.1} parent=31 // pred_check_branch
          %265 = sbr.rel (%p263) target = $region36
        $region35: #{tpu_custom_call.1} parent=31 // pred_region
          %s266 = sand.u32 %s34, 1
          %s267 = scalar_lea.sflag [#allocation3], %s266
          %s268 = sand.u32 %s34, 1
          %s269 = smul.addr %s268, 256
          %s270 = scalar_lea.vmem [#allocation2], %s269
          %s271 = smul.u32 32, %s24
          %s273 = ssub.s32 4096, 4096
          %274 = vsyncadd %s267, %s273
          %s275 = smul.addr %s271, 2
          %s276 = smul.addr %s275, 64
          %s277 = scalar_lea.hbm %s0, %s276
          %s278 = sshll.u32 %s270, 4
          %s279 = int_to_ptr.vmem [resolvable:$true] %s278
          %284 = dma.hbm_to_vmem [thread:$0]  %s277, 4096, %s279, %s267, 128, 128, 8
        $region36: #{tpu_custom_call.1} parent=31 // pred_fallthru
          _
      $region32: #{tpu_custom_call.1} parent=5 // pred_fallthru
        _
      %p285 = scmp.le.s32.totalorder 1, %s24
      %p286 = scmp.lt.s32.totalorder %s24, 3
      %p287 = pnand %p285, %p286
      %p288 = pneg %p287
      // Predicated region
      $region37: #{tpu_custom_call.1} parent=5 // pred_check
        _
      $region38: #{tpu_custom_call.1} parent=5 // pred_check_branch
        %290 = sbr.rel (%p287) target = $region40
      $region39: #{tpu_custom_call.1} parent=5 // pred_region
        %s291 = ssub.s32 %s24, 1
        %s292 = sand.u32 %s37, 1
        %s293 = scalar_lea.sflag [#allocation3], %s292
        %s294 = sand.u32 %s37, 1
        %s295 = smul.addr %s294, 256
        %s296 = scalar_lea.vmem [#allocation2], %s295
        // Predicated region
        $region41: #{tpu_custom_call.1} parent=39 // pred_check
          %p297 = pneg %p50
        $region42: #{tpu_custom_call.1} parent=39 // pred_check_branch
          %299 = sbr.rel (%p297) target = $region44
        $region43: #{tpu_custom_call.1} parent=39 // pred_region
          %300 = dma.done %s293, 4096
        $region44: #{tpu_custom_call.1} parent=39 // pred_fallthru
          _
        // Predicated region
        $region45: #{tpu_custom_call.1} parent=39 // pred_check
          %p301 = pneg %p71
        $region46: #{tpu_custom_call.1} parent=39 // pred_check_branch
          %303 = sbr.rel (%p301) target = $region48
        $region47: #{tpu_custom_call.1} parent=39 // pred_region
          %304 = dma.done [#allocation6], 4096
        $region48: #{tpu_custom_call.1} parent=39 // pred_fallthru
          _
        // Predicated region
        $region49: #{tpu_custom_call.1} parent=39 // pred_check
          %p305 = pneg %p113
        $region50: #{tpu_custom_call.1} parent=39 // pred_check_branch
          %307 = sbr.rel (%p305) target = $region52
        $region51: #{tpu_custom_call.1} parent=39 // pred_region
          %308 = dma.done [#allocation6], 8192
        $region52: #{tpu_custom_call.1} parent=39 // pred_fallthru
          _
        %s309 = sand.u32 %s37, 1
        %s310 = scalar_lea.sflag [#allocation3], %s309
        %s311 = sand.u32 %s37, 1
        %s312 = smul.addr %s311, 256
        %s313 = scalar_lea.vmem [#allocation2], %s312
        %p314 = pneg %p50
        %p315 = pneg %p47
        %p316 = pneg %p71
        %p317 = pneg %p68
        %p318 = pneg %p92
        %p319 = pneg %p89
        %p320 = pneg %p113
        %p321 = pneg %p110
        %p322 = pneg %p134
        %p323 = pneg %p131
        %p324 = pneg %p160
        %p325 = pneg %p157
        %s326 = sand.u32 %s147, 1
        %s327 = scalar_lea.sflag [#allocation4], %s326
        %s328 = sand.u32 %s147, 1
        %s329 = smul.addr %s328, 512
        %s330 = scalar_lea.vmem [#allocation8], %s329
        %p331 = pneg %p186
        %p332 = pneg %p183
        %s333 = sand.u32 %s29, 1
        %s334 = scalar_lea.sflag [#allocation10], %s333
        %s335 = sand.u32 %s173, 1
        %s336 = smul.addr %s335, 512
        %s337 = scalar_lea.vmem [#allocation9], %s336
        %p338 = pneg %p212
        %p339 = pneg %p209
        %s340 = sand.u32 %s29, 1
        %s341 = scalar_lea.sflag [#allocation10], %s340
        %s342 = sand.u32 %s199, 1
        %s343 = smul.addr %s342, 512
        %s344 = scalar_lea.vmem [#allocation11], %s343
        %s345 = smul.u32 32, %s29
        %s346 = smul.u32 32, %s29
        %s347 = smul.u32 32, %s29
        %s348 = smul.u32 32, %s29
        %v349 = vld [vmem:[%s296] sm:$0xff]
        %v350 = vld [vmem:[%s296 + $0x8] sm:$0xff]
        %v351 = vld [vmem:[%s296 + $0x10] sm:$0xff]
        %v352 = vld [vmem:[%s296 + $0x18] sm:$0xff]
        %v353 = vld [vmem:[%s296 + $0x20] sm:$0xff]
        %v354 = vld [vmem:[%s296 + $0x28] sm:$0xff]
        %v355 = vld [vmem:[%s296 + $0x30] sm:$0xff]
        %v356 = vld [vmem:[%s296 + $0x38] sm:$0xff]
        %v357 = vld [vmem:[%s296 + $0x40] sm:$0xff]
        %v358 = vld [vmem:[%s296 + $0x48] sm:$0xff]
        %v359 = vld [vmem:[%s296 + $0x50] sm:$0xff]
        %v360 = vld [vmem:[%s296 + $0x58] sm:$0xff]
        %v361 = vld [vmem:[%s296 + $0x60] sm:$0xff]
        %v362 = vld [vmem:[%s296 + $0x68] sm:$0xff]
        %v363 = vld [vmem:[%s296 + $0x70] sm:$0xff]
        %v364 = vld [vmem:[%s296 + $0x78] sm:$0xff]
        %v365 = vld [vmem:[%s296 + $0x80] sm:$0xff]
        %v366 = vld [vmem:[%s296 + $0x88] sm:$0xff]
        %v367 = vld [vmem:[%s296 + $0x90] sm:$0xff]
        %v368 = vld [vmem:[%s296 + $0x98] sm:$0xff]
        %v369 = vld [vmem:[%s296 + $0xa0] sm:$0xff]
        %v370 = vld [vmem:[%s296 + $0xa8] sm:$0xff]
        %v371 = vld [vmem:[%s296 + $0xb0] sm:$0xff]
        %v372 = vld [vmem:[%s296 + $0xb8] sm:$0xff]
        %v373 = vld [vmem:[%s296 + $0xc0] sm:$0xff]
        %v374 = vld [vmem:[%s296 + $0xc8] sm:$0xff]
        %v375 = vld [vmem:[%s296 + $0xd0] sm:$0xff]
        %v376 = vld [vmem:[%s296 + $0xd8] sm:$0xff]
        %v377 = vld [vmem:[%s296 + $0xe0] sm:$0xff]
        %v378 = vld [vmem:[%s296 + $0xe8] sm:$0xff]
        %v379 = vld [vmem:[%s296 + $0xf0] sm:$0xff]
        %v380 = vld [vmem:[%s296 + $0xf8] sm:$0xff]
        %v381 = vld [vmem:[#allocation5] sm:$0xff]
        %v382 = vld [vmem:[#allocation5 + $0x8] sm:$0xff]
        %v383 = vld [vmem:[#allocation5 + $0x10] sm:$0xff]
        %v384 = vld [vmem:[#allocation5 + $0x18] sm:$0xff]
        %v385 = vld [vmem:[#allocation5 + $0x20] sm:$0xff]
        %v386 = vld [vmem:[#allocation5 + $0x28] sm:$0xff]
        %v387 = vld [vmem:[#allocation5 + $0x30] sm:$0xff]
        %v388 = vld [vmem:[#allocation5 + $0x38] sm:$0xff]
        %v389 = vld [vmem:[#allocation5 + $0x40] sm:$0xff]
        %v390 = vld [vmem:[#allocation5 + $0x48] sm:$0xff]
        %v391 = vld [vmem:[#allocation5 + $0x50] sm:$0xff]
        %v392 = vld [vmem:[#allocation5 + $0x58] sm:$0xff]
        %v393 = vld [vmem:[#allocation5 + $0x60] sm:$0xff]
        %v394 = vld [vmem:[#allocation5 + $0x68] sm:$0xff]
        %v395 = vld [vmem:[#allocation5 + $0x70] sm:$0xff]
        %v396 = vld [vmem:[#allocation5 + $0x78] sm:$0xff]
        %v397 = vld [vmem:[#allocation5 + $0x80] sm:$0xff]
        %v398 = vld [vmem:[#allocation5 + $0x88] sm:$0xff]
        %v399 = vld [vmem:[#allocation5 + $0x90] sm:$0xff]
        %v400 = vld [vmem:[#allocation5 + $0x98] sm:$0xff]
        %v401 = vld [vmem:[#allocation5 + $0xa0] sm:$0xff]
        %v402 = vld [vmem:[#allocation5 + $0xa8] sm:$0xff]
        %v403 = vld [vmem:[#allocation5 + $0xb0] sm:$0xff]
        %v404 = vld [vmem:[#allocation5 + $0xb8] sm:$0xff]
        %v405 = vld [vmem:[#allocation5 + $0xc0] sm:$0xff]
        %v406 = vld [vmem:[#allocation5 + $0xc8] sm:$0xff]
        %v407 = vld [vmem:[#allocation5 + $0xd0] sm:$0xff]
        %v408 = vld [vmem:[#allocation5 + $0xd8] sm:$0xff]
        %v409 = vld [vmem:[#allocation5 + $0xe0] sm:$0xff]
        %v410 = vld [vmem:[#allocation5 + $0xe8] sm:$0xff]
        %v411 = vld [vmem:[#allocation5 + $0xf0] sm:$0xff]
        %v412 = vld [vmem:[#allocation5 + $0xf8] sm:$0xff]
        %v413 = vld [vmem:[%s2] sm:$0x3]
        %v415 = vlaneseq
        %v416 = vshrl.u32 %v415, 7
        %v417 = vsub.s32 0, %v416
        %v418 = vrot.slane %v413, %v417
        %v419 = vlaneseq
        %v420 = vshrl.u32 %v419, 7
        %v421 = vsub.s32 1, %v420
        %v422 = vrot.slane %v413, %v421
        %v457 = vunpack.c.l.b16 %v349
        %v458 = vunpack.c.h.b16 %v349
        %v459 = vunpack.c.l.b16 %v350
        %v460 = vunpack.c.h.b16 %v350
        %v461 = vunpack.c.l.b16 %v351
        %v462 = vunpack.c.h.b16 %v351
        %v463 = vunpack.c.l.b16 %v352
        %v464 = vunpack.c.h.b16 %v352
        %v465 = vunpack.c.l.b16 %v353
        %v466 = vunpack.c.h.b16 %v353
        %v467 = vunpack.c.l.b16 %v354
        %v468 = vunpack.c.h.b16 %v354
        %v469 = vunpack.c.l.b16 %v355
        %v470 = vunpack.c.h.b16 %v355
        %v471 = vunpack.c.l.b16 %v356
        %v472 = vunpack.c.h.b16 %v356
        %v473 = vunpack.c.l.b16 %v357
        %v474 = vunpack.c.h.b16 %v357
        %v475 = vunpack.c.l.b16 %v358
        %v476 = vunpack.c.h.b16 %v358
        %v477 = vunpack.c.l.b16 %v359
        %v478 = vunpack.c.h.b16 %v359
        %v479 = vunpack.c.l.b16 %v360
        %v480 = vunpack.c.h.b16 %v360
        %v481 = vunpack.c.l.b16 %v361
        %v482 = vunpack.c.h.b16 %v361
        %v483 = vunpack.c.l.b16 %v362
        %v484 = vunpack.c.h.b16 %v362
        %v485 = vunpack.c.l.b16 %v363
        %v486 = vunpack.c.h.b16 %v363
        %v487 = vunpack.c.l.b16 %v364
        %v488 = vunpack.c.h.b16 %v364
        %v489 = vunpack.c.l.b16 %v365
        %v490 = vunpack.c.h.b16 %v365
        %v491 = vunpack.c.l.b16 %v366
        %v492 = vunpack.c.h.b16 %v366
        %v493 = vunpack.c.l.b16 %v367
        %v494 = vunpack.c.h.b16 %v367
        %v495 = vunpack.c.l.b16 %v368
        %v496 = vunpack.c.h.b16 %v368
        %v497 = vunpack.c.l.b16 %v369
        %v498 = vunpack.c.h.b16 %v369
        %v499 = vunpack.c.l.b16 %v370
        %v500 = vunpack.c.h.b16 %v370
        %v501 = vunpack.c.l.b16 %v371
        %v502 = vunpack.c.h.b16 %v371
        %v503 = vunpack.c.l.b16 %v372
        %v504 = vunpack.c.h.b16 %v372
        %v505 = vunpack.c.l.b16 %v373
        %v506 = vunpack.c.h.b16 %v373
        %v507 = vunpack.c.l.b16 %v374
        %v508 = vunpack.c.h.b16 %v374
        %v509 = vunpack.c.l.b16 %v375
        %v510 = vunpack.c.h.b16 %v375
        %v511 = vunpack.c.l.b16 %v376
        %v512 = vunpack.c.h.b16 %v376
        %v513 = vunpack.c.l.b16 %v377
        %v514 = vunpack.c.h.b16 %v377
        %v515 = vunpack.c.l.b16 %v378
        %v516 = vunpack.c.h.b16 %v378
        %v517 = vunpack.c.l.b16 %v379
        %v518 = vunpack.c.h.b16 %v379
        %v519 = vunpack.c.l.b16 %v380
        %v520 = vunpack.c.h.b16 %v380
        %v521 = vpack.c.b16 %v459, %v457
        %v522 = vpack.c.b16 %v460, %v458
        %v523 = vpack.c.b16 %v463, %v461
        %v524 = vpack.c.b16 %v464, %v462
        %v525 = vpack.c.b16 %v467, %v465
        %v526 = vpack.c.b16 %v468, %v466
        %v527 = vpack.c.b16 %v471, %v469
        %v528 = vpack.c.b16 %v472, %v470
        %v529 = vpack.c.b16 %v475, %v473
        %v530 = vpack.c.b16 %v476, %v474
        %v531 = vpack.c.b16 %v479, %v477
        %v532 = vpack.c.b16 %v480, %v478
        %v533 = vpack.c.b16 %v483, %v481
        %v534 = vpack.c.b16 %v484, %v482
        %v535 = vpack.c.b16 %v487, %v485
        %v536 = vpack.c.b16 %v488, %v486
        %v537 = vpack.c.b16 %v491, %v489
        %v538 = vpack.c.b16 %v492, %v490
        %v539 = vpack.c.b16 %v495, %v493
        %v540 = vpack.c.b16 %v496, %v494
        %v541 = vpack.c.b16 %v499, %v497
        %v542 = vpack.c.b16 %v500, %v498
        %v543 = vpack.c.b16 %v503, %v501
        %v544 = vpack.c.b16 %v504, %v502
        %v545 = vpack.c.b16 %v507, %v505
        %v546 = vpack.c.b16 %v508, %v506
        %v547 = vpack.c.b16 %v511, %v509
        %v548 = vpack.c.b16 %v512, %v510
        %v549 = vpack.c.b16 %v515, %v513
        %v550 = vpack.c.b16 %v516, %v514
        %v551 = vpack.c.b16 %v519, %v517
        %v552 = vpack.c.b16 %v520, %v518
        %v617 = vunpack.c.l.b16 %v381
        %v618 = vunpack.c.h.b16 %v381
        %v619 = vunpack.c.l.b16 %v382
        %v620 = vunpack.c.h.b16 %v382
        %v621 = vunpack.c.l.b16 %v383
        %v622 = vunpack.c.h.b16 %v383
        %v623 = vunpack.c.l.b16 %v384
        %v624 = vunpack.c.h.b16 %v384
        %v625 = vunpack.c.l.b16 %v385
        %v626 = vunpack.c.h.b16 %v385
        %v627 = vunpack.c.l.b16 %v386
        %v628 = vunpack.c.h.b16 %v386
        %v629 = vunpack.c.l.b16 %v387
        %v630 = vunpack.c.h.b16 %v387
        %v631 = vunpack.c.l.b16 %v388
        %v632 = vunpack.c.h.b16 %v388
        %v633 = vunpack.c.l.b16 %v389
        %v634 = vunpack.c.h.b16 %v389
        %v635 = vunpack.c.l.b16 %v390
        %v636 = vunpack.c.h.b16 %v390
        %v637 = vunpack.c.l.b16 %v391
        %v638 = vunpack.c.h.b16 %v391
        %v639 = vunpack.c.l.b16 %v392
        %v640 = vunpack.c.h.b16 %v392
        %v641 = vunpack.c.l.b16 %v393
        %v642 = vunpack.c.h.b16 %v393
        %v643 = vunpack.c.l.b16 %v394
        %v644 = vunpack.c.h.b16 %v394
        %v645 = vunpack.c.l.b16 %v395
        %v646 = vunpack.c.h.b16 %v395
        %v647 = vunpack.c.l.b16 %v396
        %v648 = vunpack.c.h.b16 %v396
        %v649 = vunpack.c.l.b16 %v397
        %v650 = vunpack.c.h.b16 %v397
        %v651 = vunpack.c.l.b16 %v398
        %v652 = vunpack.c.h.b16 %v398
        %v653 = vunpack.c.l.b16 %v399
        %v654 = vunpack.c.h.b16 %v399
        %v655 = vunpack.c.l.b16 %v400
        %v656 = vunpack.c.h.b16 %v400
        %v657 = vunpack.c.l.b16 %v401
        %v658 = vunpack.c.h.b16 %v401
        %v659 = vunpack.c.l.b16 %v402
        %v660 = vunpack.c.h.b16 %v402
        %v661 = vunpack.c.l.b16 %v403
        %v662 = vunpack.c.h.b16 %v403
        %v663 = vunpack.c.l.b16 %v404
        %v664 = vunpack.c.h.b16 %v404
        %v665 = vunpack.c.l.b16 %v405
        %v666 = vunpack.c.h.b16 %v405
        %v667 = vunpack.c.l.b16 %v406
        %v668 = vunpack.c.h.b16 %v406
        %v669 = vunpack.c.l.b16 %v407
        %v670 = vunpack.c.h.b16 %v407
        %v671 = vunpack.c.l.b16 %v408
        %v672 = vunpack.c.h.b16 %v408
        %v673 = vunpack.c.l.b16 %v409
        %v674 = vunpack.c.h.b16 %v409
        %v675 = vunpack.c.l.b16 %v410
        %v676 = vunpack.c.h.b16 %v410
        %v677 = vunpack.c.l.b16 %v411
        %v678 = vunpack.c.h.b16 %v411
        %v679 = vunpack.c.l.b16 %v412
        %v680 = vunpack.c.h.b16 %v412
        %v681 = vpack.c.b16 %v619, %v617
        %v682 = vpack.c.b16 %v620, %v618
        %v683 = vpack.c.b16 %v623, %v621
        %v684 = vpack.c.b16 %v624, %v622
        %v685 = vpack.c.b16 %v627, %v625
        %v686 = vpack.c.b16 %v628, %v626
        %v687 = vpack.c.b16 %v631, %v629
        %v688 = vpack.c.b16 %v632, %v630
        %v689 = vpack.c.b16 %v635, %v633
        %v690 = vpack.c.b16 %v636, %v634
        %v691 = vpack.c.b16 %v639, %v637
        %v692 = vpack.c.b16 %v640, %v638
        %v693 = vpack.c.b16 %v643, %v641
        %v694 = vpack.c.b16 %v644, %v642
        %v695 = vpack.c.b16 %v647, %v645
        %v696 = vpack.c.b16 %v648, %v646
        %v697 = vpack.c.b16 %v651, %v649
        %v698 = vpack.c.b16 %v652, %v650
        %v699 = vpack.c.b16 %v655, %v653
        %v700 = vpack.c.b16 %v656, %v654
        %v701 = vpack.c.b16 %v659, %v657
        %v702 = vpack.c.b16 %v660, %v658
        %v703 = vpack.c.b16 %v663, %v661
        %v704 = vpack.c.b16 %v664, %v662
        %v705 = vpack.c.b16 %v667, %v665
        %v706 = vpack.c.b16 %v668, %v666
        %v707 = vpack.c.b16 %v671, %v669
        %v708 = vpack.c.b16 %v672, %v670
        %v709 = vpack.c.b16 %v675, %v673
        %v710 = vpack.c.b16 %v676, %v674
        %v711 = vpack.c.b16 %v679, %v677
        %v712 = vpack.c.b16 %v680, %v678
        %745 = vmatprep.subr.bf16.mxu0 %v682
        %746 = vmatpush1.bf16.msra.mxu0 %v681
        %747 = vmatprep.subr.bf16.mxu0 %v684
        %748 = vmatpush1.bf16.msra.mxu0 %v683
        %749 = vmatprep.subr.bf16.mxu0 %v686
        %750 = vmatpush1.bf16.msra.mxu0 %v685
        %751 = vmatprep.subr.bf16.mxu0 %v688
        %752 = vmatpush1.bf16.msra.mxu0 %v687
        %753 = vmatprep.subr.bf16.mxu0 %v690
        %754 = vmatpush1.bf16.msra.mxu0 %v689
        %755 = vmatprep.subr.bf16.mxu0 %v692
        %756 = vmatpush1.bf16.msra.mxu0 %v691
        %757 = vmatprep.subr.bf16.mxu0 %v694
        %758 = vmatpush1.bf16.msra.mxu0 %v693
        %759 = vmatprep.subr.bf16.mxu0 %v696
        %760 = vmatpush1.bf16.msra.mxu0 %v695
        %761 = vmatprep.subr.bf16.mxu0 %v698
        %762 = vmatpush1.bf16.msra.mxu0 %v697
        %763 = vmatprep.subr.bf16.mxu0 %v700
        %764 = vmatpush1.bf16.msra.mxu0 %v699
        %765 = vmatprep.subr.bf16.mxu0 %v702
        %766 = vmatpush1.bf16.msra.mxu0 %v701
        %767 = vmatprep.subr.bf16.mxu0 %v704
        %768 = vmatpush1.bf16.msra.mxu0 %v703
        %769 = vmatprep.subr.bf16.mxu0 %v706
        %770 = vmatpush1.bf16.msra.mxu0 %v705
        %771 = vmatprep.subr.bf16.mxu0 %v708
        %772 = vmatpush1.bf16.msra.mxu0 %v707
        %773 = vmatprep.subr.bf16.mxu0 %v710
        %774 = vmatpush1.bf16.msra.mxu0 %v709
        %775 = vmatprep.subr.bf16.mxu0 %v712
        %776 = vmatpush1.bf16.msra.mxu0 %v711
        %777 = vmatprep.mubr.bf16.mxu0 %v522
        %778 = vmatmul.mubr.bf16.gmra.mrb[0].mxu0 %v521
        %v779 = vpop.f32.mrb[0].mxu0
        %v780 = vadd.f32 %v418, %v779
        %v781 = vpop.f32.mrb[0].mxu0
        %v782 = vadd.f32 %v422, %v781
        %v783 = vpop.f32.mrb[0].mxu0
        %v784 = vadd.f32 %v418, %v783
        %v785 = vpop.f32.mrb[0].mxu0
        %v786 = vadd.f32 %v422, %v785
        %787 = vmatprep.mubr.bf16.mxu0 %v524
        %788 = vmatmul.mubr.bf16.gmra.mrb[0].mxu0 %v523
        %v789 = vpop.f32.mrb[0].mxu0
        %v790 = vadd.f32 %v418, %v789
        %v791 = vpop.f32.mrb[0].mxu0
        %v792 = vadd.f32 %v422, %v791
        %v793 = vpop.f32.mrb[0].mxu0
        %v794 = vadd.f32 %v418, %v793
        %v795 = vpop.f32.mrb[0].mxu0
        %v796 = vadd.f32 %v422, %v795
        %797 = vmatprep.mubr.bf16.mxu0 %v526
        %798 = vmatmul.mubr.bf16.gmra.mrb[0].mxu0 %v525
        %v799 = vpop.f32.mrb[0].mxu0
        %v800 = vadd.f32 %v418, %v799
        %v801 = vpop.f32.mrb[0].mxu0
        %v802 = vadd.f32 %v422, %v801
        %v803 = vpop.f32.mrb[0].mxu0
        %v804 = vadd.f32 %v418, %v803
        %v805 = vpop.f32.mrb[0].mxu0
        %v806 = vadd.f32 %v422, %v805
        %807 = vmatprep.mubr.bf16.mxu0 %v528
        %808 = vmatmul.mubr.bf16.gmra.mrb[0].mxu0 %v527
        %v809 = vpop.f32.mrb[0].mxu0
        %v810 = vadd.f32 %v418, %v809
        %v811 = vpop.f32.mrb[0].mxu0
        %v812 = vadd.f32 %v422, %v811
        %v813 = vpop.f32.mrb[0].mxu0
        %v814 = vadd.f32 %v418, %v813
        %v815 = vpop.f32.mrb[0].mxu0
        %v816 = vadd.f32 %v422, %v815
        %817 = vmatprep.mubr.bf16.mxu0 %v530
        %818 = vmatmul.mubr.bf16.gmra.mrb[0].mxu0 %v529
        %v819 = vpop.f32.mrb[0].mxu0
        %v820 = vadd.f32 %v418, %v819
        %v821 = vpop.f32.mrb[0].mxu0
        %v822 = vadd.f32 %v422, %v821
        %v823 = vpop.f32.mrb[0].mxu0
        %v824 = vadd.f32 %v418, %v823
        %v825 = vpop.f32.mrb[0].mxu0
        %v826 = vadd.f32 %v422, %v825
        %827 = vmatprep.mubr.bf16.mxu0 %v532
        %828 = vmatmul.mubr.bf16.gmra.mrb[0].mxu0 %v531
        %v829 = vpop.f32.mrb[0].mxu0
        %v830 = vadd.f32 %v418, %v829
        %v831 = vpop.f32.mrb[0].mxu0
        %v832 = vadd.f32 %v422, %v831
        %v833 = vpop.f32.mrb[0].mxu0
        %v834 = vadd.f32 %v418, %v833
        %v835 = vpop.f32.mrb[0].mxu0
        %v836 = vadd.f32 %v422, %v835
        %837 = vmatprep.mubr.bf16.mxu0 %v534
        %838 = vmatmul.mubr.bf16.gmra.mrb[0].mxu0 %v533
        %v839 = vpop.f32.mrb[0].mxu0
        %v840 = vadd.f32 %v418, %v839
        %v841 = vpop.f32.mrb[0].mxu0
        %v842 = vadd.f32 %v422, %v841
        %v843 = vpop.f32.mrb[0].mxu0
        %v844 = vadd.f32 %v418, %v843
        %v845 = vpop.f32.mrb[0].mxu0
        %v846 = vadd.f32 %v422, %v845
        %847 = vmatprep.mubr.bf16.mxu0 %v536
        %848 = vmatmul.mubr.bf16.gmra.mrb[0].mxu0 %v535
        %v849 = vpop.f32.mrb[0].mxu0
        %v850 = vadd.f32 %v418, %v849
        %v851 = vpop.f32.mrb[0].mxu0
        %v852 = vadd.f32 %v422, %v851
        %v853 = vpop.f32.mrb[0].mxu0
        %v854 = vadd.f32 %v418, %v853
        %v855 = vpop.f32.mrb[0].mxu0
        %v856 = vadd.f32 %v422, %v855
        %857 = vmatprep.mubr.bf16.mxu0 %v538
        %858 = vmatmul.mubr.bf16.gmra.mrb[0].mxu0 %v537
        %v859 = vpop.f32.mrb[0].mxu0
        %v860 = vadd.f32 %v418, %v859
        %v861 = vpop.f32.mrb[0].mxu0
        %v862 = vadd.f32 %v422, %v861
        %v863 = vpop.f32.mrb[0].mxu0
        %v864 = vadd.f32 %v418, %v863
        %v865 = vpop.f32.mrb[0].mxu0
        %v866 = vadd.f32 %v422, %v865
        %867 = vmatprep.mubr.bf16.mxu0 %v540
        %868 = vmatmul.mubr.bf16.gmra.mrb[0].mxu0 %v539
        %v869 = vpop.f32.mrb[0].mxu0
        %v870 = vadd.f32 %v418, %v869
        %v871 = vpop.f32.mrb[0].mxu0
        %v872 = vadd.f32 %v422, %v871
        %v873 = vpop.f32.mrb[0].mxu0
        %v874 = vadd.f32 %v418, %v873
        %v875 = vpop.f32.mrb[0].mxu0
        %v876 = vadd.f32 %v422, %v875
        %877 = vmatprep.mubr.bf16.mxu0 %v542
        %878 = vmatmul.mubr.bf16.gmra.mrb[0].mxu0 %v541
        %v879 = vpop.f32.mrb[0].mxu0
        %v880 = vadd.f32 %v418, %v879
        %v881 = vpop.f32.mrb[0].mxu0
        %v882 = vadd.f32 %v422, %v881
        %v883 = vpop.f32.mrb[0].mxu0
        %v884 = vadd.f32 %v418, %v883
        %v885 = vpop.f32.mrb[0].mxu0
        %v886 = vadd.f32 %v422, %v885
        %887 = vmatprep.mubr.bf16.mxu0 %v544
        %888 = vmatmul.mubr.bf16.gmra.mrb[0].mxu0 %v543
        %v889 = vpop.f32.mrb[0].mxu0
        %v890 = vadd.f32 %v418, %v889
        %v891 = vpop.f32.mrb[0].mxu0
        %v892 = vadd.f32 %v422, %v891
        %v893 = vpop.f32.mrb[0].mxu0
        %v894 = vadd.f32 %v418, %v893
        %v895 = vpop.f32.mrb[0].mxu0
        %v896 = vadd.f32 %v422, %v895
        %897 = vmatprep.mubr.bf16.mxu0 %v546
        %898 = vmatmul.mubr.bf16.gmra.mrb[0].mxu0 %v545
        %v899 = vpop.f32.mrb[0].mxu0
        %v900 = vadd.f32 %v418, %v899
        %v901 = vpop.f32.mrb[0].mxu0
        %v902 = vadd.f32 %v422, %v901
        %v903 = vpop.f32.mrb[0].mxu0
        %v904 = vadd.f32 %v418, %v903
        %v905 = vpop.f32.mrb[0].mxu0
        %v906 = vadd.f32 %v422, %v905
        %907 = vmatprep.mubr.bf16.mxu0 %v548
        %908 = vmatmul.mubr.bf16.gmra.mrb[0].mxu0 %v547
        %v909 = vpop.f32.mrb[0].mxu0
        %v910 = vadd.f32 %v418, %v909
        %v911 = vpop.f32.mrb[0].mxu0
        %v912 = vadd.f32 %v422, %v911
        %v913 = vpop.f32.mrb[0].mxu0
        %v914 = vadd.f32 %v418, %v913
        %v915 = vpop.f32.mrb[0].mxu0
        %v916 = vadd.f32 %v422, %v915
        %917 = vmatprep.mubr.bf16.mxu0 %v550
        %918 = vmatmul.mubr.bf16.gmra.mrb[0].mxu0 %v549
        %v919 = vpop.f32.mrb[0].mxu0
        %v920 = vadd.f32 %v418, %v919
        %v921 = vpop.f32.mrb[0].mxu0
        %v922 = vadd.f32 %v422, %v921
        %v923 = vpop.f32.mrb[0].mxu0
        %v924 = vadd.f32 %v418, %v923
        %v925 = vpop.f32.mrb[0].mxu0
        %v926 = vadd.f32 %v422, %v925
        %927 = vmatprep.mubr.bf16.mxu0 %v552
        %928 = vmatmul.mubr.bf16.gmra.mrb[0].mxu0 %v551
        %v929 = vpop.f32.mrb[0].mxu0
        %v930 = vadd.f32 %v418, %v929
        %v931 = vpop.f32.mrb[0].mxu0
        %v932 = vadd.f32 %v422, %v931
        %v933 = vpop.f32.mrb[0].mxu0
        %v934 = vadd.f32 %v418, %v933
        %v935 = vpop.f32.mrb[0].mxu0
        %v936 = vadd.f32 %v422, %v935
        %937 = vdwg.mxu0
        %v938 = vmax.f32 %v780, 0.0
        %v939 = vmax.f32 %v782, 0.0
        %v940 = vmax.f32 %v784, 0.0
        %v941 = vmax.f32 %v786, 0.0
        %v942 = vmax.f32 %v790, 0.0
        %v943 = vmax.f32 %v792, 0.0
        %v944 = vmax.f32 %v794, 0.0
        %v945 = vmax.f32 %v796, 0.0
        %v946 = vmax.f32 %v800, 0.0
        %v947 = vmax.f32 %v802, 0.0
        %v948 = vmax.f32 %v804, 0.0
        %v949 = vmax.f32 %v806, 0.0
        %v950 = vmax.f32 %v810, 0.0
        %v951 = vmax.f32 %v812, 0.0
        %v952 = vmax.f32 %v814, 0.0
        %v953 = vmax.f32 %v816, 0.0
        %v954 = vmax.f32 %v820, 0.0
        %v955 = vmax.f32 %v822, 0.0
        %v956 = vmax.f32 %v824, 0.0
        %v957 = vmax.f32 %v826, 0.0
        %v958 = vmax.f32 %v830, 0.0
        %v959 = vmax.f32 %v832, 0.0
        %v960 = vmax.f32 %v834, 0.0
        %v961 = vmax.f32 %v836, 0.0
        %v962 = vmax.f32 %v840, 0.0
        %v963 = vmax.f32 %v842, 0.0
        %v964 = vmax.f32 %v844, 0.0
        %v965 = vmax.f32 %v846, 0.0
        %v966 = vmax.f32 %v850, 0.0
        %v967 = vmax.f32 %v852, 0.0
        %v968 = vmax.f32 %v854, 0.0
        %v969 = vmax.f32 %v856, 0.0
        %v970 = vmax.f32 %v860, 0.0
        %v971 = vmax.f32 %v862, 0.0
        %v972 = vmax.f32 %v864, 0.0
        %v973 = vmax.f32 %v866, 0.0
        %v974 = vmax.f32 %v870, 0.0
        %v975 = vmax.f32 %v872, 0.0
        %v976 = vmax.f32 %v874, 0.0
        %v977 = vmax.f32 %v876, 0.0
        %v978 = vmax.f32 %v880, 0.0
        %v979 = vmax.f32 %v882, 0.0
        %v980 = vmax.f32 %v884, 0.0
        %v981 = vmax.f32 %v886, 0.0
        %v982 = vmax.f32 %v890, 0.0
        %v983 = vmax.f32 %v892, 0.0
        %v984 = vmax.f32 %v894, 0.0
        %v985 = vmax.f32 %v896, 0.0
        %v986 = vmax.f32 %v900, 0.0
        %v987 = vmax.f32 %v902, 0.0
        %v988 = vmax.f32 %v904, 0.0
        %v989 = vmax.f32 %v906, 0.0
        %v990 = vmax.f32 %v910, 0.0
        %v991 = vmax.f32 %v912, 0.0
        %v992 = vmax.f32 %v914, 0.0
        %v993 = vmax.f32 %v916, 0.0
        %v994 = vmax.f32 %v920, 0.0
        %v995 = vmax.f32 %v922, 0.0
        %v996 = vmax.f32 %v924, 0.0
        %v997 = vmax.f32 %v926, 0.0
        %v998 = vmax.f32 %v930, 0.0
        %v999 = vmax.f32 %v932, 0.0
        %v1000 = vmax.f32 %v934, 0.0
        %v1001 = vmax.f32 %v936, 0.0
        %1002 = vst [vmem:[%s344] sm:$0xff] %v938
        %1003 = vst [vmem:[%s344 + $0x8] sm:$0xff] %v939
        %1004 = vst [vmem:[%s344 + $0x10] sm:$0xff] %v940
        %1005 = vst [vmem:[%s344 + $0x18] sm:$0xff] %v941
        %1006 = vst [vmem:[%s344 + $0x20] sm:$0xff] %v942
        %1007 = vst [vmem:[%s344 + $0x28] sm:$0xff] %v943
        %1008 = vst [vmem:[%s344 + $0x30] sm:$0xff] %v944
        %1009 = vst [vmem:[%s344 + $0x38] sm:$0xff] %v945
        %1010 = vst [vmem:[%s344 + $0x40] sm:$0xff] %v946
        %1011 = vst [vmem:[%s344 + $0x48] sm:$0xff] %v947
        %1012 = vst [vmem:[%s344 + $0x50] sm:$0xff] %v948
        %1013 = vst [vmem:[%s344 + $0x58] sm:$0xff] %v949
        %1014 = vst [vmem:[%s344 + $0x60] sm:$0xff] %v950
        %1015 = vst [vmem:[%s344 + $0x68] sm:$0xff] %v951
        %1016 = vst [vmem:[%s344 + $0x70] sm:$0xff] %v952
        %1017 = vst [vmem:[%s344 + $0x78] sm:$0xff] %v953
        %1018 = vst [vmem:[%s344 + $0x80] sm:$0xff] %v954
        %1019 = vst [vmem:[%s344 + $0x88] sm:$0xff] %v955
        %1020 = vst [vmem:[%s344 + $0x90] sm:$0xff] %v956
        %1021 = vst [vmem:[%s344 + $0x98] sm:$0xff] %v957
        %1022 = vst [vmem:[%s344 + $0xa0] sm:$0xff] %v958
        %1023 = vst [vmem:[%s344 + $0xa8] sm:$0xff] %v959
        %1024 = vst [vmem:[%s344 + $0xb0] sm:$0xff] %v960
        %1025 = vst [vmem:[%s344 + $0xb8] sm:$0xff] %v961
        %1026 = vst [vmem:[%s344 + $0xc0] sm:$0xff] %v962
        %1027 = vst [vmem:[%s344 + $0xc8] sm:$0xff] %v963
        %1028 = vst [vmem:[%s344 + $0xd0] sm:$0xff] %v964
        %1029 = vst [vmem:[%s344 + $0xd8] sm:$0xff] %v965
        %1030 = vst [vmem:[%s344 + $0xe0] sm:$0xff] %v966
        %1031 = vst [vmem:[%s344 + $0xe8] sm:$0xff] %v967
        %1032 = vst [vmem:[%s344 + $0xf0] sm:$0xff] %v968
        %1033 = vst [vmem:[%s344 + $0xf8] sm:$0xff] %v969
        %1034 = vst [vmem:[%s344 + $0x100] sm:$0xff] %v970
        %1035 = vst [vmem:[%s344 + $0x108] sm:$0xff] %v971
        %1036 = vst [vmem:[%s344 + $0x110] sm:$0xff] %v972
        %1037 = vst [vmem:[%s344 + $0x118] sm:$0xff] %v973
        %1038 = vst [vmem:[%s344 + $0x120] sm:$0xff] %v974
        %1039 = vst [vmem:[%s344 + $0x128] sm:$0xff] %v975
        %1040 = vst [vmem:[%s344 + $0x130] sm:$0xff] %v976
        %1041 = vst [vmem:[%s344 + $0x138] sm:$0xff] %v977
        %1042 = vst [vmem:[%s344 + $0x140] sm:$0xff] %v978
        %1043 = vst [vmem:[%s344 + $0x148] sm:$0xff] %v979
        %1044 = vst [vmem:[%s344 + $0x150] sm:$0xff] %v980
        %1045 = vst [vmem:[%s344 + $0x158] sm:$0xff] %v981
        %1046 = vst [vmem:[%s344 + $0x160] sm:$0xff] %v982
        %1047 = vst [vmem:[%s344 + $0x168] sm:$0xff] %v983
        %1048 = vst [vmem:[%s344 + $0x170] sm:$0xff] %v984
        %1049 = vst [vmem:[%s344 + $0x178] sm:$0xff] %v985
        %1050 = vst [vmem:[%s344 + $0x180] sm:$0xff] %v986
        %1051 = vst [vmem:[%s344 + $0x188] sm:$0xff] %v987
        %1052 = vst [vmem:[%s344 + $0x190] sm:$0xff] %v988
        %1053 = vst [vmem:[%s344 + $0x198] sm:$0xff] %v989
        %1054 = vst [vmem:[%s344 + $0x1a0] sm:$0xff] %v990
        %1055 = vst [vmem:[%s344 + $0x1a8] sm:$0xff] %v991
        %1056 = vst [vmem:[%s344 + $0x1b0] sm:$0xff] %v992
        %1057 = vst [vmem:[%s344 + $0x1b8] sm:$0xff] %v993
        %1058 = vst [vmem:[%s344 + $0x1c0] sm:$0xff] %v994
        %1059 = vst [vmem:[%s344 + $0x1c8] sm:$0xff] %v995
        %1060 = vst [vmem:[%s344 + $0x1d0] sm:$0xff] %v996
        %1061 = vst [vmem:[%s344 + $0x1d8] sm:$0xff] %v997
        %1062 = vst [vmem:[%s344 + $0x1e0] sm:$0xff] %v998
        %1063 = vst [vmem:[%s344 + $0x1e8] sm:$0xff] %v999
        %1064 = vst [vmem:[%s344 + $0x1f0] sm:$0xff] %v1000
        %1065 = vst [vmem:[%s344 + $0x1f8] sm:$0xff] %v1001
        %v1066 = vpack.c.bf16 %v940, %v938
        %v1067 = vpack.c.bf16 %v941, %v939
        %v1068 = vpack.c.bf16 %v944, %v942
        %v1069 = vpack.c.bf16 %v945, %v943
        %v1070 = vpack.c.bf16 %v948, %v946
        %v1071 = vpack.c.bf16 %v949, %v947
        %v1072 = vpack.c.bf16 %v952, %v950
        %v1073 = vpack.c.bf16 %v953, %v951
        %v1074 = vpack.c.bf16 %v956, %v954
        %v1075 = vpack.c.bf16 %v957, %v955
        %v1076 = vpack.c.bf16 %v960, %v958
        %v1077 = vpack.c.bf16 %v961, %v959
        %v1078 = vpack.c.bf16 %v964, %v962
        %v1079 = vpack.c.bf16 %v965, %v963
        %v1080 = vpack.c.bf16 %v968, %v966
        %v1081 = vpack.c.bf16 %v969, %v967
        %v1082 = vpack.c.bf16 %v972, %v970
        %v1083 = vpack.c.bf16 %v973, %v971
        %v1084 = vpack.c.bf16 %v976, %v974
        %v1085 = vpack.c.bf16 %v977, %v975
        %v1086 = vpack.c.bf16 %v980, %v978
        %v1087 = vpack.c.bf16 %v981, %v979
        %v1088 = vpack.c.bf16 %v984, %v982
        %v1089 = vpack.c.bf16 %v985, %v983
        %v1090 = vpack.c.bf16 %v988, %v986
        %v1091 = vpack.c.bf16 %v989, %v987
        %v1092 = vpack.c.bf16 %v992, %v990
        %v1093 = vpack.c.bf16 %v993, %v991
        %v1094 = vpack.c.bf16 %v996, %v994
        %v1095 = vpack.c.bf16 %v997, %v995
        %v1096 = vpack.c.bf16 %v1000, %v998
        %v1097 = vpack.c.bf16 %v1001, %v999
        %v1098 = vld [vmem:[#allocation7] sm:$0xff]
        %v1099 = vld [vmem:[#allocation7 + $0x8] sm:$0xff]
        %v1100 = vld [vmem:[#allocation7 + $0x10] sm:$0xff]
        %v1101 = vld [vmem:[#allocation7 + $0x18] sm:$0xff]
        %v1102 = vld [vmem:[#allocation7 + $0x20] sm:$0xff]
        %v1103 = vld [vmem:[#allocation7 + $0x28] sm:$0xff]
        %v1104 = vld [vmem:[#allocation7 + $0x30] sm:$0xff]
        %v1105 = vld [vmem:[#allocation7 + $0x38] sm:$0xff]
        %v1106 = vld [vmem:[#allocation7 + $0x40] sm:$0xff]
        %v1107 = vld [vmem:[#allocation7 + $0x48] sm:$0xff]
        %v1108 = vld [vmem:[#allocation7 + $0x50] sm:$0xff]
        %v1109 = vld [vmem:[#allocation7 + $0x58] sm:$0xff]
        %v1110 = vld [vmem:[#allocation7 + $0x60] sm:$0xff]
        %v1111 = vld [vmem:[#allocation7 + $0x68] sm:$0xff]
        %v1112 = vld [vmem:[#allocation7 + $0x70] sm:$0xff]
        %v1113 = vld [vmem:[#allocation7 + $0x78] sm:$0xff]
        %v1114 = vld [vmem:[#allocation7 + $0x80] sm:$0xff]
        %v1115 = vld [vmem:[#allocation7 + $0x88] sm:$0xff]
        %v1116 = vld [vmem:[#allocation7 + $0x90] sm:$0xff]
        %v1117 = vld [vmem:[#allocation7 + $0x98] sm:$0xff]
        %v1118 = vld [vmem:[#allocation7 + $0xa0] sm:$0xff]
        %v1119 = vld [vmem:[#allocation7 + $0xa8] sm:$0xff]
        %v1120 = vld [vmem:[#allocation7 + $0xb0] sm:$0xff]
        %v1121 = vld [vmem:[#allocation7 + $0xb8] sm:$0xff]
        %v1122 = vld [vmem:[#allocation7 + $0xc0] sm:$0xff]
        %v1123 = vld [vmem:[#allocation7 + $0xc8] sm:$0xff]
        %v1124 = vld [vmem:[#allocation7 + $0xd0] sm:$0xff]
        %v1125 = vld [vmem:[#allocation7 + $0xd8] sm:$0xff]
        %v1126 = vld [vmem:[#allocation7 + $0xe0] sm:$0xff]
        %v1127 = vld [vmem:[#allocation7 + $0xe8] sm:$0xff]
        %v1128 = vld [vmem:[#allocation7 + $0xf0] sm:$0xff]
        %v1129 = vld [vmem:[#allocation7 + $0xf8] sm:$0xff]
        %v1130 = vld [vmem:[#allocation7 + $0x100] sm:$0xff]
        %v1131 = vld [vmem:[#allocation7 + $0x108] sm:$0xff]
        %v1132 = vld [vmem:[#allocation7 + $0x110] sm:$0xff]
        %v1133 = vld [vmem:[#allocation7 + $0x118] sm:$0xff]
        %v1134 = vld [vmem:[#allocation7 + $0x120] sm:$0xff]
        %v1135 = vld [vmem:[#allocation7 + $0x128] sm:$0xff]
        %v1136 = vld [vmem:[#allocation7 + $0x130] sm:$0xff]
        %v1137 = vld [vmem:[#allocation7 + $0x138] sm:$0xff]
        %v1138 = vld [vmem:[#allocation7 + $0x140] sm:$0xff]
        %v1139 = vld [vmem:[#allocation7 + $0x148] sm:$0xff]
        %v1140 = vld [vmem:[#allocation7 + $0x150] sm:$0xff]
        %v1141 = vld [vmem:[#allocation7 + $0x158] sm:$0xff]
        %v1142 = vld [vmem:[#allocation7 + $0x160] sm:$0xff]
        %v1143 = vld [vmem:[#allocation7 + $0x168] sm:$0xff]
        %v1144 = vld [vmem:[#allocation7 + $0x170] sm:$0xff]
        %v1145 = vld [vmem:[#allocation7 + $0x178] sm:$0xff]
        %v1146 = vld [vmem:[#allocation7 + $0x180] sm:$0xff]
        %v1147 = vld [vmem:[#allocation7 + $0x188] sm:$0xff]
        %v1148 = vld [vmem:[#allocation7 + $0x190] sm:$0xff]
        %v1149 = vld [vmem:[#allocation7 + $0x198] sm:$0xff]
        %v1150 = vld [vmem:[#allocation7 + $0x1a0] sm:$0xff]
        %v1151 = vld [vmem:[#allocation7 + $0x1a8] sm:$0xff]
        %v1152 = vld [vmem:[#allocation7 + $0x1b0] sm:$0xff]
        %v1153 = vld [vmem:[#allocation7 + $0x1b8] sm:$0xff]
        %v1154 = vld [vmem:[#allocation7 + $0x1c0] sm:$0xff]
        %v1155 = vld [vmem:[#allocation7 + $0x1c8] sm:$0xff]
        %v1156 = vld [vmem:[#allocation7 + $0x1d0] sm:$0xff]
        %v1157 = vld [vmem:[#allocation7 + $0x1d8] sm:$0xff]
        %v1158 = vld [vmem:[#allocation7 + $0x1e0] sm:$0xff]
        %v1159 = vld [vmem:[#allocation7 + $0x1e8] sm:$0xff]
        %v1160 = vld [vmem:[#allocation7 + $0x1f0] sm:$0xff]
        %v1161 = vld [vmem:[#allocation7 + $0x1f8] sm:$0xff]
        %v1162 = vld [vmem:[%s4] sm:$0xf]
        %v1164 = vlaneseq
        %v1165 = vshrl.u32 %v1164, 7
        %v1166 = vsub.s32 0, %v1165
        %v1167 = vrot.slane %v1162, %v1166
        %v1168 = vlaneseq
        %v1169 = vshrl.u32 %v1168, 7
        %v1170 = vsub.s32 1, %v1169
        %v1171 = vrot.slane %v1162, %v1170
        %v1172 = vlaneseq
        %v1173 = vshrl.u32 %v1172, 7
        %v1174 = vsub.s32 2, %v1173
        %v1175 = vrot.slane %v1162, %v1174
        %v1176 = vlaneseq
        %v1177 = vshrl.u32 %v1176, 7
        %v1178 = vsub.s32 3, %v1177
        %v1179 = vrot.slane %v1162, %v1178
        %v1248 = vunpack.c.l.b16 %v1098
        %v1249 = vunpack.c.h.b16 %v1098
        %v1250 = vunpack.c.l.b16 %v1099
        %v1251 = vunpack.c.h.b16 %v1099
        %v1252 = vunpack.c.l.b16 %v1100
        %v1253 = vunpack.c.h.b16 %v1100
        %v1254 = vunpack.c.l.b16 %v1101
        %v1255 = vunpack.c.h.b16 %v1101
        %v1256 = vunpack.c.l.b16 %v1102
        %v1257 = vunpack.c.h.b16 %v1102
        %v1258 = vunpack.c.l.b16 %v1103
        %v1259 = vunpack.c.h.b16 %v1103
        %v1260 = vunpack.c.l.b16 %v1104
        %v1261 = vunpack.c.h.b16 %v1104
        %v1262 = vunpack.c.l.b16 %v1105
        %v1263 = vunpack.c.h.b16 %v1105
        %v1264 = vunpack.c.l.b16 %v1106
        %v1265 = vunpack.c.h.b16 %v1106
        %v1266 = vunpack.c.l.b16 %v1107
        %v1267 = vunpack.c.h.b16 %v1107
        %v1268 = vunpack.c.l.b16 %v1108
        %v1269 = vunpack.c.h.b16 %v1108
        %v1270 = vunpack.c.l.b16 %v1109
        %v1271 = vunpack.c.h.b16 %v1109
        %v1272 = vunpack.c.l.b16 %v1110
        %v1273 = vunpack.c.h.b16 %v1110
        %v1274 = vunpack.c.l.b16 %v1111
        %v1275 = vunpack.c.h.b16 %v1111
        %v1276 = vunpack.c.l.b16 %v1112
        %v1277 = vunpack.c.h.b16 %v1112
        %v1278 = vunpack.c.l.b16 %v1113
        %v1279 = vunpack.c.h.b16 %v1113
        %v1280 = vunpack.c.l.b16 %v1114
        %v1281 = vunpack.c.h.b16 %v1114
        %v1282 = vunpack.c.l.b16 %v1115
        %v1283 = vunpack.c.h.b16 %v1115
        %v1284 = vunpack.c.l.b16 %v1116
        %v1285 = vunpack.c.h.b16 %v1116
        %v1286 = vunpack.c.l.b16 %v1117
        %v1287 = vunpack.c.h.b16 %v1117
        %v1288 = vunpack.c.l.b16 %v1118
        %v1289 = vunpack.c.h.b16 %v1118
        %v1290 = vunpack.c.l.b16 %v1119
        %v1291 = vunpack.c.h.b16 %v1119
        %v1292 = vunpack.c.l.b16 %v1120
        %v1293 = vunpack.c.h.b16 %v1120
        %v1294 = vunpack.c.l.b16 %v1121
        %v1295 = vunpack.c.h.b16 %v1121
        %v1296 = vunpack.c.l.b16 %v1122
        %v1297 = vunpack.c.h.b16 %v1122
        %v1298 = vunpack.c.l.b16 %v1123
        %v1299 = vunpack.c.h.b16 %v1123
        %v1300 = vunpack.c.l.b16 %v1124
        %v1301 = vunpack.c.h.b16 %v1124
        %v1302 = vunpack.c.l.b16 %v1125
        %v1303 = vunpack.c.h.b16 %v1125
        %v1304 = vunpack.c.l.b16 %v1126
        %v1305 = vunpack.c.h.b16 %v1126
        %v1306 = vunpack.c.l.b16 %v1127
        %v1307 = vunpack.c.h.b16 %v1127
        %v1308 = vunpack.c.l.b16 %v1128
        %v1309 = vunpack.c.h.b16 %v1128
        %v1310 = vunpack.c.l.b16 %v1129
        %v1311 = vunpack.c.h.b16 %v1129
        %v1312 = vunpack.c.l.b16 %v1130
        %v1313 = vunpack.c.h.b16 %v1130
        %v1314 = vunpack.c.l.b16 %v1131
        %v1315 = vunpack.c.h.b16 %v1131
        %v1316 = vunpack.c.l.b16 %v1132
        %v1317 = vunpack.c.h.b16 %v1132
        %v1318 = vunpack.c.l.b16 %v1133
        %v1319 = vunpack.c.h.b16 %v1133
        %v1320 = vunpack.c.l.b16 %v1134
        %v1321 = vunpack.c.h.b16 %v1134
        %v1322 = vunpack.c.l.b16 %v1135
        %v1323 = vunpack.c.h.b16 %v1135
        %v1324 = vunpack.c.l.b16 %v1136
        %v1325 = vunpack.c.h.b16 %v1136
        %v1326 = vunpack.c.l.b16 %v1137
        %v1327 = vunpack.c.h.b16 %v1137
        %v1328 = vunpack.c.l.b16 %v1138
        %v1329 = vunpack.c.h.b16 %v1138
        %v1330 = vunpack.c.l.b16 %v1139
        %v1331 = vunpack.c.h.b16 %v1139
        %v1332 = vunpack.c.l.b16 %v1140
        %v1333 = vunpack.c.h.b16 %v1140
        %v1334 = vunpack.c.l.b16 %v1141
        %v1335 = vunpack.c.h.b16 %v1141
        %v1336 = vunpack.c.l.b16 %v1142
        %v1337 = vunpack.c.h.b16 %v1142
        %v1338 = vunpack.c.l.b16 %v1143
        %v1339 = vunpack.c.h.b16 %v1143
        %v1340 = vunpack.c.l.b16 %v1144
        %v1341 = vunpack.c.h.b16 %v1144
        %v1342 = vunpack.c.l.b16 %v1145
        %v1343 = vunpack.c.h.b16 %v1145
        %v1344 = vunpack.c.l.b16 %v1146
        %v1345 = vunpack.c.h.b16 %v1146
        %v1346 = vunpack.c.l.b16 %v1147
        %v1347 = vunpack.c.h.b16 %v1147
        %v1348 = vunpack.c.l.b16 %v1148
        %v1349 = vunpack.c.h.b16 %v1148
        %v1350 = vunpack.c.l.b16 %v1149
        %v1351 = vunpack.c.h.b16 %v1149
        %v1352 = vunpack.c.l.b16 %v1150
        %v1353 = vunpack.c.h.b16 %v1150
        %v1354 = vunpack.c.l.b16 %v1151
        %v1355 = vunpack.c.h.b16 %v1151
        %v1356 = vunpack.c.l.b16 %v1152
        %v1357 = vunpack.c.h.b16 %v1152
        %v1358 = vunpack.c.l.b16 %v1153
        %v1359 = vunpack.c.h.b16 %v1153
        %v1360 = vunpack.c.l.b16 %v1154
        %v1361 = vunpack.c.h.b16 %v1154
        %v1362 = vunpack.c.l.b16 %v1155
        %v1363 = vunpack.c.h.b16 %v1155
        %v1364 = vunpack.c.l.b16 %v1156
        %v1365 = vunpack.c.h.b16 %v1156
        %v1366 = vunpack.c.l.b16 %v1157
        %v1367 = vunpack.c.h.b16 %v1157
        %v1368 = vunpack.c.l.b16 %v1158
        %v1369 = vunpack.c.h.b16 %v1158
        %v1370 = vunpack.c.l.b16 %v1159
        %v1371 = vunpack.c.h.b16 %v1159
        %v1372 = vunpack.c.l.b16 %v1160
        %v1373 = vunpack.c.h.b16 %v1160
        %v1374 = vunpack.c.l.b16 %v1161
        %v1375 = vunpack.c.h.b16 %v1161
        %v1376 = vpack.c.b16 %v1252, %v1248
        %v1377 = vpack.c.b16 %v1253, %v1249
        %v1378 = vpack.c.b16 %v1254, %v1250
        %v1379 = vpack.c.b16 %v1255, %v1251
        %v1380 = vpack.c.b16 %v1260, %v1256
        %v1381 = vpack.c.b16 %v1261, %v1257
        %v1382 = vpack.c.b16 %v1262, %v1258
        %v1383 = vpack.c.b16 %v1263, %v1259
        %v1384 = vpack.c.b16 %v1268, %v1264
        %v1385 = vpack.c.b16 %v1269, %v1265
        %v1386 = vpack.c.b16 %v1270, %v1266
        %v1387 = vpack.c.b16 %v1271, %v1267
        %v1388 = vpack.c.b16 %v1276, %v1272
        %v1389 = vpack.c.b16 %v1277, %v1273
        %v1390 = vpack.c.b16 %v1278, %v1274
        %v1391 = vpack.c.b16 %v1279, %v1275
        %v1392 = vpack.c.b16 %v1284, %v1280
        %v1393 = vpack.c.b16 %v1285, %v1281
        %v1394 = vpack.c.b16 %v1286, %v1282
        %v1395 = vpack.c.b16 %v1287, %v1283
        %v1396 = vpack.c.b16 %v1292, %v1288
        %v1397 = vpack.c.b16 %v1293, %v1289
        %v1398 = vpack.c.b16 %v1294, %v1290
        %v1399 = vpack.c.b16 %v1295, %v1291
        %v1400 = vpack.c.b16 %v1300, %v1296
        %v1401 = vpack.c.b16 %v1301, %v1297
        %v1402 = vpack.c.b16 %v1302, %v1298
        %v1403 = vpack.c.b16 %v1303, %v1299
        %v1404 = vpack.c.b16 %v1308, %v1304
        %v1405 = vpack.c.b16 %v1309, %v1305
        %v1406 = vpack.c.b16 %v1310, %v1306
        %v1407 = vpack.c.b16 %v1311, %v1307
        %v1408 = vpack.c.b16 %v1316, %v1312
        %v1409 = vpack.c.b16 %v1317, %v1313
        %v1410 = vpack.c.b16 %v1318, %v1314
        %v1411 = vpack.c.b16 %v1319, %v1315
        %v1412 = vpack.c.b16 %v1324, %v1320
        %v1413 = vpack.c.b16 %v1325, %v1321
        %v1414 = vpack.c.b16 %v1326, %v1322
        %v1415 = vpack.c.b16 %v1327, %v1323
        %v1416 = vpack.c.b16 %v1332, %v1328
        %v1417 = vpack.c.b16 %v1333, %v1329
        %v1418 = vpack.c.b16 %v1334, %v1330
        %v1419 = vpack.c.b16 %v1335, %v1331
        %v1420 = vpack.c.b16 %v1340, %v1336
        %v1421 = vpack.c.b16 %v1341, %v1337
        %v1422 = vpack.c.b16 %v1342, %v1338
        %v1423 = vpack.c.b16 %v1343, %v1339
        %v1424 = vpack.c.b16 %v1348, %v1344
        %v1425 = vpack.c.b16 %v1349, %v1345
        %v1426 = vpack.c.b16 %v1350, %v1346
        %v1427 = vpack.c.b16 %v1351, %v1347
        %v1428 = vpack.c.b16 %v1356, %v1352
        %v1429 = vpack.c.b16 %v1357, %v1353
        %v1430 = vpack.c.b16 %v1358, %v1354
        %v1431 = vpack.c.b16 %v1359, %v1355
        %v1432 = vpack.c.b16 %v1364, %v1360
        %v1433 = vpack.c.b16 %v1365, %v1361
        %v1434 = vpack.c.b16 %v1366, %v1362
        %v1435 = vpack.c.b16 %v1367, %v1363
        %v1436 = vpack.c.b16 %v1372, %v1368
        %v1437 = vpack.c.b16 %v1373, %v1369
        %v1438 = vpack.c.b16 %v1374, %v1370
        %v1439 = vpack.c.b16 %v1375, %v1371
        %1504 = vmatprep.subr.bf16.mxu0 %v1377
        %1505 = vmatpush1.bf16.msra.mxu0 %v1376
        %1506 = vmatprep.subr.bf16.mxu0 %v1381
        %1507 = vmatpush1.bf16.msra.mxu0 %v1380
        %1508 = vmatprep.subr.bf16.mxu0 %v1385
        %1509 = vmatpush1.bf16.msra.mxu0 %v1384
        %1510 = vmatprep.subr.bf16.mxu0 %v1389
        %1511 = vmatpush1.bf16.msra.mxu0 %v1388
        %1512 = vmatprep.subr.bf16.mxu0 %v1393
        %1513 = vmatpush1.bf16.msra.mxu0 %v1392
        %1514 = vmatprep.subr.bf16.mxu0 %v1397
        %1515 = vmatpush1.bf16.msra.mxu0 %v1396
        %1516 = vmatprep.subr.bf16.mxu0 %v1401
        %1517 = vmatpush1.bf16.msra.mxu0 %v1400
        %1518 = vmatprep.subr.bf16.mxu0 %v1405
        %1519 = vmatpush1.bf16.msra.mxu0 %v1404
        %1520 = vmatprep.subr.bf16.mxu0 %v1409
        %1521 = vmatpush1.bf16.msra.mxu0 %v1408
        %1522 = vmatprep.subr.bf16.mxu0 %v1413
        %1523 = vmatpush1.bf16.msra.mxu0 %v1412
        %1524 = vmatprep.subr.bf16.mxu0 %v1417
        %1525 = vmatpush1.bf16.msra.mxu0 %v1416
        %1526 = vmatprep.subr.bf16.mxu0 %v1421
        %1527 = vmatpush1.bf16.msra.mxu0 %v1420
        %1528 = vmatprep.subr.bf16.mxu0 %v1425
        %1529 = vmatpush1.bf16.msra.mxu0 %v1424
        %1530 = vmatprep.subr.bf16.mxu0 %v1429
        %1531 = vmatpush1.bf16.msra.mxu0 %v1428
        %1532 = vmatprep.subr.bf16.mxu0 %v1433
        %1533 = vmatpush1.bf16.msra.mxu0 %v1432
        %1534 = vmatprep.subr.bf16.mxu0 %v1437
        %1535 = vmatpush1.bf16.msra.mxu0 %v1436
        %1536 = vmatprep.mubr.bf16.mxu0 %v1067
        %1537 = vmatmul.mubr.bf16.gmra.mrb[0].mxu0 %v1066
        %v1538 = vpop.f32.mrb[0].mxu0
        %v1539 = vadd.f32 %v1167, %v1538
        %v1540 = vpop.f32.mrb[0].mxu0
        %v1541 = vadd.f32 %v1171, %v1540
        %v1542 = vpop.f32.mrb[0].mxu0
        %v1543 = vadd.f32 %v1167, %v1542
        %v1544 = vpop.f32.mrb[0].mxu0
        %v1545 = vadd.f32 %v1171, %v1544
        %1546 = vmatprep.mubr.bf16.mxu0 %v1069
        %1547 = vmatmul.mubr.bf16.gmra.mrb[0].mxu0 %v1068
        %v1548 = vpop.f32.mrb[0].mxu0
        %v1549 = vadd.f32 %v1167, %v1548
        %v1550 = vpop.f32.mrb[0].mxu0
        %v1551 = vadd.f32 %v1171, %v1550
        %v1552 = vpop.f32.mrb[0].mxu0
        %v1553 = vadd.f32 %v1167, %v1552
        %v1554 = vpop.f32.mrb[0].mxu0
        %v1555 = vadd.f32 %v1171, %v1554
        %1556 = vmatprep.mubr.bf16.mxu0 %v1071
        %1557 = vmatmul.mubr.bf16.gmra.mrb[0].mxu0 %v1070
        %v1558 = vpop.f32.mrb[0].mxu0
        %v1559 = vadd.f32 %v1167, %v1558
        %v1560 = vpop.f32.mrb[0].mxu0
        %v1561 = vadd.f32 %v1171, %v1560
        %v1562 = vpop.f32.mrb[0].mxu0
        %v1563 = vadd.f32 %v1167, %v1562
        %v1564 = vpop.f32.mrb[0].mxu0
        %v1565 = vadd.f32 %v1171, %v1564
        %1566 = vmatprep.mubr.bf16.mxu0 %v1073
        %1567 = vmatmul.mubr.bf16.gmra.mrb[0].mxu0 %v1072
        %v1568 = vpop.f32.mrb[0].mxu0
        %v1569 = vadd.f32 %v1167, %v1568
        %v1570 = vpop.f32.mrb[0].mxu0
        %v1571 = vadd.f32 %v1171, %v1570
        %v1572 = vpop.f32.mrb[0].mxu0
        %v1573 = vadd.f32 %v1167, %v1572
        %v1574 = vpop.f32.mrb[0].mxu0
        %v1575 = vadd.f32 %v1171, %v1574
        %1576 = vmatprep.mubr.bf16.mxu0 %v1075
        %1577 = vmatmul.mubr.bf16.gmra.mrb[0].mxu0 %v1074
        %v1578 = vpop.f32.mrb[0].mxu0
        %v1579 = vadd.f32 %v1167, %v1578
        %v1580 = vpop.f32.mrb[0].mxu0
        %v1581 = vadd.f32 %v1171, %v1580
        %v1582 = vpop.f32.mrb[0].mxu0
        %v1583 = vadd.f32 %v1167, %v1582
        %v1584 = vpop.f32.mrb[0].mxu0
        %v1585 = vadd.f32 %v1171, %v1584
        %1586 = vmatprep.mubr.bf16.mxu0 %v1077
        %1587 = vmatmul.mubr.bf16.gmra.mrb[0].mxu0 %v1076
        %v1588 = vpop.f32.mrb[0].mxu0
        %v1589 = vadd.f32 %v1167, %v1588
        %v1590 = vpop.f32.mrb[0].mxu0
        %v1591 = vadd.f32 %v1171, %v1590
        %v1592 = vpop.f32.mrb[0].mxu0
        %v1593 = vadd.f32 %v1167, %v1592
        %v1594 = vpop.f32.mrb[0].mxu0
        %v1595 = vadd.f32 %v1171, %v1594
        %1596 = vmatprep.mubr.bf16.mxu0 %v1079
        %1597 = vmatmul.mubr.bf16.gmra.mrb[0].mxu0 %v1078
        %v1598 = vpop.f32.mrb[0].mxu0
        %v1599 = vadd.f32 %v1167, %v1598
        %v1600 = vpop.f32.mrb[0].mxu0
        %v1601 = vadd.f32 %v1171, %v1600
        %v1602 = vpop.f32.mrb[0].mxu0
        %v1603 = vadd.f32 %v1167, %v1602
        %v1604 = vpop.f32.mrb[0].mxu0
        %v1605 = vadd.f32 %v1171, %v1604
        %1606 = vmatprep.mubr.bf16.mxu0 %v1081
        %1607 = vmatmul.mubr.bf16.gmra.mrb[0].mxu0 %v1080
        %v1608 = vpop.f32.mrb[0].mxu0
        %v1609 = vadd.f32 %v1167, %v1608
        %v1610 = vpop.f32.mrb[0].mxu0
        %v1611 = vadd.f32 %v1171, %v1610
        %v1612 = vpop.f32.mrb[0].mxu0
        %v1613 = vadd.f32 %v1167, %v1612
        %v1614 = vpop.f32.mrb[0].mxu0
        %v1615 = vadd.f32 %v1171, %v1614
        %1616 = vmatprep.mubr.bf16.mxu0 %v1083
        %1617 = vmatmul.mubr.bf16.gmra.mrb[0].mxu0 %v1082
        %v1618 = vpop.f32.mrb[0].mxu0
        %v1619 = vadd.f32 %v1167, %v1618
        %v1620 = vpop.f32.mrb[0].mxu0
        %v1621 = vadd.f32 %v1171, %v1620
        %v1622 = vpop.f32.mrb[0].mxu0
        %v1623 = vadd.f32 %v1167, %v1622
        %v1624 = vpop.f32.mrb[0].mxu0
        %v1625 = vadd.f32 %v1171, %v1624
        %1626 = vmatprep.mubr.bf16.mxu0 %v1085
        %1627 = vmatmul.mubr.bf16.gmra.mrb[0].mxu0 %v1084
        %v1628 = vpop.f32.mrb[0].mxu0
        %v1629 = vadd.f32 %v1167, %v1628
        %v1630 = vpop.f32.mrb[0].mxu0
        %v1631 = vadd.f32 %v1171, %v1630
        %v1632 = vpop.f32.mrb[0].mxu0
        %v1633 = vadd.f32 %v1167, %v1632
        %v1634 = vpop.f32.mrb[0].mxu0
        %v1635 = vadd.f32 %v1171, %v1634
        %1636 = vmatprep.mubr.bf16.mxu0 %v1087
        %1637 = vmatmul.mubr.bf16.gmra.mrb[0].mxu0 %v1086
        %v1638 = vpop.f32.mrb[0].mxu0
        %v1639 = vadd.f32 %v1167, %v1638
        %v1640 = vpop.f32.mrb[0].mxu0
        %v1641 = vadd.f32 %v1171, %v1640
        %v1642 = vpop.f32.mrb[0].mxu0
        %v1643 = vadd.f32 %v1167, %v1642
        %v1644 = vpop.f32.mrb[0].mxu0
        %v1645 = vadd.f32 %v1171, %v1644
        %1646 = vmatprep.mubr.bf16.mxu0 %v1089
        %1647 = vmatmul.mubr.bf16.gmra.mrb[0].mxu0 %v1088
        %v1648 = vpop.f32.mrb[0].mxu0
        %v1649 = vadd.f32 %v1167, %v1648
        %v1650 = vpop.f32.mrb[0].mxu0
        %v1651 = vadd.f32 %v1171, %v1650
        %v1652 = vpop.f32.mrb[0].mxu0
        %v1653 = vadd.f32 %v1167, %v1652
        %v1654 = vpop.f32.mrb[0].mxu0
        %v1655 = vadd.f32 %v1171, %v1654
        %1656 = vmatprep.mubr.bf16.mxu0 %v1091
        %1657 = vmatmul.mubr.bf16.gmra.mrb[0].mxu0 %v1090
        %v1658 = vpop.f32.mrb[0].mxu0
        %v1659 = vadd.f32 %v1167, %v1658
        %v1660 = vpop.f32.mrb[0].mxu0
        %v1661 = vadd.f32 %v1171, %v1660
        %v1662 = vpop.f32.mrb[0].mxu0
        %v1663 = vadd.f32 %v1167, %v1662
        %v1664 = vpop.f32.mrb[0].mxu0
        %v1665 = vadd.f32 %v1171, %v1664
        %1666 = vmatprep.mubr.bf16.mxu0 %v1093
        %1667 = vmatmul.mubr.bf16.gmra.mrb[0].mxu0 %v1092
        %v1668 = vpop.f32.mrb[0].mxu0
        %v1669 = vadd.f32 %v1167, %v1668
        %v1670 = vpop.f32.mrb[0].mxu0
        %v1671 = vadd.f32 %v1171, %v1670
        %v1672 = vpop.f32.mrb[0].mxu0
        %v1673 = vadd.f32 %v1167, %v1672
        %v1674 = vpop.f32.mrb[0].mxu0
        %v1675 = vadd.f32 %v1171, %v1674
        %1676 = vmatprep.mubr.bf16.mxu0 %v1095
        %1677 = vmatmul.mubr.bf16.gmra.mrb[0].mxu0 %v1094
        %v1678 = vpop.f32.mrb[0].mxu0
        %v1679 = vadd.f32 %v1167, %v1678
        %v1680 = vpop.f32.mrb[0].mxu0
        %v1681 = vadd.f32 %v1171, %v1680
        %v1682 = vpop.f32.mrb[0].mxu0
        %v1683 = vadd.f32 %v1167, %v1682
        %v1684 = vpop.f32.mrb[0].mxu0
        %v1685 = vadd.f32 %v1171, %v1684
        %1686 = vmatprep.mubr.bf16.mxu0 %v1097
        %1687 = vmatmul.mubr.bf16.gmra.mrb[0].mxu0 %v1096
        %v1688 = vpop.f32.mrb[0].mxu0
        %v1689 = vadd.f32 %v1167, %v1688
        %v1690 = vpop.f32.mrb[0].mxu0
        %v1691 = vadd.f32 %v1171, %v1690
        %v1692 = vpop.f32.mrb[0].mxu0
        %v1693 = vadd.f32 %v1167, %v1692
        %v1694 = vpop.f32.mrb[0].mxu0
        %v1695 = vadd.f32 %v1171, %v1694
        %1696 = vdwg.mxu0
        %1697 = vmatprep.subr.bf16.mxu0 %v1379
        %1698 = vmatpush1.bf16.msra.mxu0 %v1378
        %1699 = vmatprep.subr.bf16.mxu0 %v1383
        %1700 = vmatpush1.bf16.msra.mxu0 %v1382
        %1701 = vmatprep.subr.bf16.mxu0 %v1387
        %1702 = vmatpush1.bf16.msra.mxu0 %v1386
        %1703 = vmatprep.subr.bf16.mxu0 %v1391
        %1704 = vmatpush1.bf16.msra.mxu0 %v1390
        %1705 = vmatprep.subr.bf16.mxu0 %v1395
        %1706 = vmatpush1.bf16.msra.mxu0 %v1394
        %1707 = vmatprep.subr.bf16.mxu0 %v1399
        %1708 = vmatpush1.bf16.msra.mxu0 %v1398
        %1709 = vmatprep.subr.bf16.mxu0 %v1403
        %1710 = vmatpush1.bf16.msra.mxu0 %v1402
        %1711 = vmatprep.subr.bf16.mxu0 %v1407
        %1712 = vmatpush1.bf16.msra.mxu0 %v1406
        %1713 = vmatprep.subr.bf16.mxu0 %v1411
        %1714 = vmatpush1.bf16.msra.mxu0 %v1410
        %1715 = vmatprep.subr.bf16.mxu0 %v1415
        %1716 = vmatpush1.bf16.msra.mxu0 %v1414
        %1717 = vmatprep.subr.bf16.mxu0 %v1419
        %1718 = vmatpush1.bf16.msra.mxu0 %v1418
        %1719 = vmatprep.subr.bf16.mxu0 %v1423
        %1720 = vmatpush1.bf16.msra.mxu0 %v1422
        %1721 = vmatprep.subr.bf16.mxu0 %v1427
        %1722 = vmatpush1.bf16.msra.mxu0 %v1426
        %1723 = vmatprep.subr.bf16.mxu0 %v1431
        %1724 = vmatpush1.bf16.msra.mxu0 %v1430
        %1725 = vmatprep.subr.bf16.mxu0 %v1435
        %1726 = vmatpush1.bf16.msra.mxu0 %v1434
        %1727 = vmatprep.subr.bf16.mxu0 %v1439
        %1728 = vmatpush1.bf16.msra.mxu0 %v1438
        %1729 = vmatprep.mubr.bf16.mxu0 %v1067
        %1730 = vmatmul.mubr.bf16.gmra.mrb[0].mxu0 %v1066
        %v1731 = vpop.f32.mrb[0].mxu0
        %v1732 = vadd.f32 %v1175, %v1731
        %v1733 = vpop.f32.mrb[0].mxu0
        %v1734 = vadd.f32 %v1179, %v1733
        %v1735 = vpop.f32.mrb[0].mxu0
        %v1736 = vadd.f32 %v1175, %v1735
        %v1737 = vpop.f32.mrb[0].mxu0
        %v1738 = vadd.f32 %v1179, %v1737
        %1739 = vmatprep.mubr.bf16.mxu0 %v1069
        %1740 = vmatmul.mubr.bf16.gmra.mrb[0].mxu0 %v1068
        %v1741 = vpop.f32.mrb[0].mxu0
        %v1742 = vadd.f32 %v1175, %v1741
        %v1743 = vpop.f32.mrb[0].mxu0
        %v1744 = vadd.f32 %v1179, %v1743
        %v1745 = vpop.f32.mrb[0].mxu0
        %v1746 = vadd.f32 %v1175, %v1745
        %v1747 = vpop.f32.mrb[0].mxu0
        %v1748 = vadd.f32 %v1179, %v1747
        %1749 = vmatprep.mubr.bf16.mxu0 %v1071
        %1750 = vmatmul.mubr.bf16.gmra.mrb[0].mxu0 %v1070
        %v1751 = vpop.f32.mrb[0].mxu0
        %v1752 = vadd.f32 %v1175, %v1751
        %v1753 = vpop.f32.mrb[0].mxu0
        %v1754 = vadd.f32 %v1179, %v1753
        %v1755 = vpop.f32.mrb[0].mxu0
        %v1756 = vadd.f32 %v1175, %v1755
        %v1757 = vpop.f32.mrb[0].mxu0
        %v1758 = vadd.f32 %v1179, %v1757
        %1759 = vmatprep.mubr.bf16.mxu0 %v1073
        %1760 = vmatmul.mubr.bf16.gmra.mrb[0].mxu0 %v1072
        %v1761 = vpop.f32.mrb[0].mxu0
        %v1762 = vadd.f32 %v1175, %v1761
        %v1763 = vpop.f32.mrb[0].mxu0
        %v1764 = vadd.f32 %v1179, %v1763
        %v1765 = vpop.f32.mrb[0].mxu0
        %v1766 = vadd.f32 %v1175, %v1765
        %v1767 = vpop.f32.mrb[0].mxu0
        %v1768 = vadd.f32 %v1179, %v1767
        %1769 = vmatprep.mubr.bf16.mxu0 %v1075
        %1770 = vmatmul.mubr.bf16.gmra.mrb[0].mxu0 %v1074
        %v1771 = vpop.f32.mrb[0].mxu0
        %v1772 = vadd.f32 %v1175, %v1771
        %v1773 = vpop.f32.mrb[0].mxu0
        %v1774 = vadd.f32 %v1179, %v1773
        %v1775 = vpop.f32.mrb[0].mxu0
        %v1776 = vadd.f32 %v1175, %v1775
        %v1777 = vpop.f32.mrb[0].mxu0
        %v1778 = vadd.f32 %v1179, %v1777
        %1779 = vmatprep.mubr.bf16.mxu0 %v1077
        %1780 = vmatmul.mubr.bf16.gmra.mrb[0].mxu0 %v1076
        %v1781 = vpop.f32.mrb[0].mxu0
        %v1782 = vadd.f32 %v1175, %v1781
        %v1783 = vpop.f32.mrb[0].mxu0
        %v1784 = vadd.f32 %v1179, %v1783
        %v1785 = vpop.f32.mrb[0].mxu0
        %v1786 = vadd.f32 %v1175, %v1785
        %v1787 = vpop.f32.mrb[0].mxu0
        %v1788 = vadd.f32 %v1179, %v1787
        %1789 = vmatprep.mubr.bf16.mxu0 %v1079
        %1790 = vmatmul.mubr.bf16.gmra.mrb[0].mxu0 %v1078
        %v1791 = vpop.f32.mrb[0].mxu0
        %v1792 = vadd.f32 %v1175, %v1791
        %v1793 = vpop.f32.mrb[0].mxu0
        %v1794 = vadd.f32 %v1179, %v1793
        %v1795 = vpop.f32.mrb[0].mxu0
        %v1796 = vadd.f32 %v1175, %v1795
        %v1797 = vpop.f32.mrb[0].mxu0
        %v1798 = vadd.f32 %v1179, %v1797
        %1799 = vmatprep.mubr.bf16.mxu0 %v1081
        %1800 = vmatmul.mubr.bf16.gmra.mrb[0].mxu0 %v1080
        %v1801 = vpop.f32.mrb[0].mxu0
        %v1802 = vadd.f32 %v1175, %v1801
        %v1803 = vpop.f32.mrb[0].mxu0
        %v1804 = vadd.f32 %v1179, %v1803
        %v1805 = vpop.f32.mrb[0].mxu0
        %v1806 = vadd.f32 %v1175, %v1805
        %v1807 = vpop.f32.mrb[0].mxu0
        %v1808 = vadd.f32 %v1179, %v1807
        %1809 = vmatprep.mubr.bf16.mxu0 %v1083
        %1810 = vmatmul.mubr.bf16.gmra.mrb[0].mxu0 %v1082
        %v1811 = vpop.f32.mrb[0].mxu0
        %v1812 = vadd.f32 %v1175, %v1811
        %v1813 = vpop.f32.mrb[0].mxu0
        %v1814 = vadd.f32 %v1179, %v1813
        %v1815 = vpop.f32.mrb[0].mxu0
        %v1816 = vadd.f32 %v1175, %v1815
        %v1817 = vpop.f32.mrb[0].mxu0
        %v1818 = vadd.f32 %v1179, %v1817
        %1819 = vmatprep.mubr.bf16.mxu0 %v1085
        %1820 = vmatmul.mubr.bf16.gmra.mrb[0].mxu0 %v1084
        %v1821 = vpop.f32.mrb[0].mxu0
        %v1822 = vadd.f32 %v1175, %v1821
        %v1823 = vpop.f32.mrb[0].mxu0
        %v1824 = vadd.f32 %v1179, %v1823
        %v1825 = vpop.f32.mrb[0].mxu0
        %v1826 = vadd.f32 %v1175, %v1825
        %v1827 = vpop.f32.mrb[0].mxu0
        %v1828 = vadd.f32 %v1179, %v1827
        %1829 = vmatprep.mubr.bf16.mxu0 %v1087
        %1830 = vmatmul.mubr.bf16.gmra.mrb[0].mxu0 %v1086
        %v1831 = vpop.f32.mrb[0].mxu0
        %v1832 = vadd.f32 %v1175, %v1831
        %v1833 = vpop.f32.mrb[0].mxu0
        %v1834 = vadd.f32 %v1179, %v1833
        %v1835 = vpop.f32.mrb[0].mxu0
        %v1836 = vadd.f32 %v1175, %v1835
        %v1837 = vpop.f32.mrb[0].mxu0
        %v1838 = vadd.f32 %v1179, %v1837
        %1839 = vmatprep.mubr.bf16.mxu0 %v1089
        %1840 = vmatmul.mubr.bf16.gmra.mrb[0].mxu0 %v1088
        %v1841 = vpop.f32.mrb[0].mxu0
        %v1842 = vadd.f32 %v1175, %v1841
        %v1843 = vpop.f32.mrb[0].mxu0
        %v1844 = vadd.f32 %v1179, %v1843
        %v1845 = vpop.f32.mrb[0].mxu0
        %v1846 = vadd.f32 %v1175, %v1845
        %v1847 = vpop.f32.mrb[0].mxu0
        %v1848 = vadd.f32 %v1179, %v1847
        %1849 = vmatprep.mubr.bf16.mxu0 %v1091
        %1850 = vmatmul.mubr.bf16.gmra.mrb[0].mxu0 %v1090
        %v1851 = vpop.f32.mrb[0].mxu0
        %v1852 = vadd.f32 %v1175, %v1851
        %v1853 = vpop.f32.mrb[0].mxu0
        %v1854 = vadd.f32 %v1179, %v1853
        %v1855 = vpop.f32.mrb[0].mxu0
        %v1856 = vadd.f32 %v1175, %v1855
        %v1857 = vpop.f32.mrb[0].mxu0
        %v1858 = vadd.f32 %v1179, %v1857
        %1859 = vmatprep.mubr.bf16.mxu0 %v1093
        %1860 = vmatmul.mubr.bf16.gmra.mrb[0].mxu0 %v1092
        %v1861 = vpop.f32.mrb[0].mxu0
        %v1862 = vadd.f32 %v1175, %v1861
        %v1863 = vpop.f32.mrb[0].mxu0
        %v1864 = vadd.f32 %v1179, %v1863
        %v1865 = vpop.f32.mrb[0].mxu0
        %v1866 = vadd.f32 %v1175, %v1865
        %v1867 = vpop.f32.mrb[0].mxu0
        %v1868 = vadd.f32 %v1179, %v1867
        %1869 = vmatprep.mubr.bf16.mxu0 %v1095
        %1870 = vmatmul.mubr.bf16.gmra.mrb[0].mxu0 %v1094
        %v1871 = vpop.f32.mrb[0].mxu0
        %v1872 = vadd.f32 %v1175, %v1871
        %v1873 = vpop.f32.mrb[0].mxu0
        %v1874 = vadd.f32 %v1179, %v1873
        %v1875 = vpop.f32.mrb[0].mxu0
        %v1876 = vadd.f32 %v1175, %v1875
        %v1877 = vpop.f32.mrb[0].mxu0
        %v1878 = vadd.f32 %v1179, %v1877
        %1879 = vmatprep.mubr.bf16.mxu0 %v1097
        %1880 = vmatmul.mubr.bf16.gmra.mrb[0].mxu0 %v1096
        %v1881 = vpop.f32.mrb[0].mxu0
        %v1882 = vadd.f32 %v1175, %v1881
        %v1883 = vpop.f32.mrb[0].mxu0
        %v1884 = vadd.f32 %v1179, %v1883
        %v1885 = vpop.f32.mrb[0].mxu0
        %v1886 = vadd.f32 %v1175, %v1885
        %v1887 = vpop.f32.mrb[0].mxu0
        %v1888 = vadd.f32 %v1179, %v1887
        %1889 = vdwg.mxu0
        %v1890 = vxor.u32 %v1539, 2147483648
        %v1891 = vxor.u32 %v1541, 2147483648
        %v1892 = vxor.u32 %v1732, 2147483648
        %v1893 = vxor.u32 %v1734, 2147483648
        %v1894 = vxor.u32 %v1543, 2147483648
        %v1895 = vxor.u32 %v1545, 2147483648
        %v1896 = vxor.u32 %v1736, 2147483648
        %v1897 = vxor.u32 %v1738, 2147483648
        %v1898 = vxor.u32 %v1549, 2147483648
        %v1899 = vxor.u32 %v1551, 2147483648
        %v1900 = vxor.u32 %v1742, 2147483648
        %v1901 = vxor.u32 %v1744, 2147483648
        %v1902 = vxor.u32 %v1553, 2147483648
        %v1903 = vxor.u32 %v1555, 2147483648
        %v1904 = vxor.u32 %v1746, 2147483648
        %v1905 = vxor.u32 %v1748, 2147483648
        %v1906 = vxor.u32 %v1559, 2147483648
        %v1907 = vxor.u32 %v1561, 2147483648
        %v1908 = vxor.u32 %v1752, 2147483648
        %v1909 = vxor.u32 %v1754, 2147483648
        %v1910 = vxor.u32 %v1563, 2147483648
        %v1911 = vxor.u32 %v1565, 2147483648
        %v1912 = vxor.u32 %v1756, 2147483648
        %v1913 = vxor.u32 %v1758, 2147483648
        %v1914 = vxor.u32 %v1569, 2147483648
        %v1915 = vxor.u32 %v1571, 2147483648
        %v1916 = vxor.u32 %v1762, 2147483648
        %v1917 = vxor.u32 %v1764, 2147483648
        %v1918 = vxor.u32 %v1573, 2147483648
        %v1919 = vxor.u32 %v1575, 2147483648
        %v1920 = vxor.u32 %v1766, 2147483648
        %v1921 = vxor.u32 %v1768, 2147483648
        %v1922 = vxor.u32 %v1579, 2147483648
        %v1923 = vxor.u32 %v1581, 2147483648
        %v1924 = vxor.u32 %v1772, 2147483648
        %v1925 = vxor.u32 %v1774, 2147483648
        %v1926 = vxor.u32 %v1583, 2147483648
        %v1927 = vxor.u32 %v1585, 2147483648
        %v1928 = vxor.u32 %v1776, 2147483648
        %v1929 = vxor.u32 %v1778, 2147483648
        %v1930 = vxor.u32 %v1589, 2147483648
        %v1931 = vxor.u32 %v1591, 2147483648
        %v1932 = vxor.u32 %v1782, 2147483648
        %v1933 = vxor.u32 %v1784, 2147483648
        %v1934 = vxor.u32 %v1593, 2147483648
        %v1935 = vxor.u32 %v1595, 2147483648
        %v1936 = vxor.u32 %v1786, 2147483648
        %v1937 = vxor.u32 %v1788, 2147483648
        %v1938 = vxor.u32 %v1599, 2147483648
        %v1939 = vxor.u32 %v1601, 2147483648
        %v1940 = vxor.u32 %v1792, 2147483648
        %v1941 = vxor.u32 %v1794, 2147483648
        %v1942 = vxor.u32 %v1603, 2147483648
        %v1943 = vxor.u32 %v1605, 2147483648
        %v1944 = vxor.u32 %v1796, 2147483648
        %v1945 = vxor.u32 %v1798, 2147483648
        %v1946 = vxor.u32 %v1609, 2147483648
        %v1947 = vxor.u32 %v1611, 2147483648
        %v1948 = vxor.u32 %v1802, 2147483648
        %v1949 = vxor.u32 %v1804, 2147483648
        %v1950 = vxor.u32 %v1613, 2147483648
        %v1951 = vxor.u32 %v1615, 2147483648
        %v1952 = vxor.u32 %v1806, 2147483648
        %v1953 = vxor.u32 %v1808, 2147483648
        %v1954 = vxor.u32 %v1619, 2147483648
        %v1955 = vxor.u32 %v1621, 2147483648
        %v1956 = vxor.u32 %v1812, 2147483648
        %v1957 = vxor.u32 %v1814, 2147483648
        %v1958 = vxor.u32 %v1623, 2147483648
        %v1959 = vxor.u32 %v1625, 2147483648
        %v1960 = vxor.u32 %v1816, 2147483648
        %v1961 = vxor.u32 %v1818, 2147483648
        %v1962 = vxor.u32 %v1629, 2147483648
        %v1963 = vxor.u32 %v1631, 2147483648
        %v1964 = vxor.u32 %v1822, 2147483648
        %v1965 = vxor.u32 %v1824, 2147483648
        %v1966 = vxor.u32 %v1633, 2147483648
        %v1967 = vxor.u32 %v1635, 2147483648
        %v1968 = vxor.u32 %v1826, 2147483648
        %v1969 = vxor.u32 %v1828, 2147483648
        %v1970 = vxor.u32 %v1639, 2147483648
        %v1971 = vxor.u32 %v1641, 2147483648
        %v1972 = vxor.u32 %v1832, 2147483648
        %v1973 = vxor.u32 %v1834, 2147483648
        %v1974 = vxor.u32 %v1643, 2147483648
        %v1975 = vxor.u32 %v1645, 2147483648
        %v1976 = vxor.u32 %v1836, 2147483648
        %v1977 = vxor.u32 %v1838, 2147483648
        %v1978 = vxor.u32 %v1649, 2147483648
        %v1979 = vxor.u32 %v1651, 2147483648
        %v1980 = vxor.u32 %v1842, 2147483648
        %v1981 = vxor.u32 %v1844, 2147483648
        %v1982 = vxor.u32 %v1653, 2147483648
        %v1983 = vxor.u32 %v1655, 2147483648
        %v1984 = vxor.u32 %v1846, 2147483648
        %v1985 = vxor.u32 %v1848, 2147483648
        %v1986 = vxor.u32 %v1659, 2147483648
        %v1987 = vxor.u32 %v1661, 2147483648
        %v1988 = vxor.u32 %v1852, 2147483648
        %v1989 = vxor.u32 %v1854, 2147483648
        %v1990 = vxor.u32 %v1663, 2147483648
        %v1991 = vxor.u32 %v1665, 2147483648
        %v1992 = vxor.u32 %v1856, 2147483648
        %v1993 = vxor.u32 %v1858, 2147483648
        %v1994 = vxor.u32 %v1669, 2147483648
        %v1995 = vxor.u32 %v1671, 2147483648
        %v1996 = vxor.u32 %v1862, 2147483648
        %v1997 = vxor.u32 %v1864, 2147483648
        %v1998 = vxor.u32 %v1673, 2147483648
        %v1999 = vxor.u32 %v1675, 2147483648
        %v2000 = vxor.u32 %v1866, 2147483648
        %v2001 = vxor.u32 %v1868, 2147483648
        %v2002 = vxor.u32 %v1679, 2147483648
        %v2003 = vxor.u32 %v1681, 2147483648
        %v2004 = vxor.u32 %v1872, 2147483648
        %v2005 = vxor.u32 %v1874, 2147483648
        %v2006 = vxor.u32 %v1683, 2147483648
        %v2007 = vxor.u32 %v1685, 2147483648
        %v2008 = vxor.u32 %v1876, 2147483648
        %v2009 = vxor.u32 %v1878, 2147483648
        %v2010 = vxor.u32 %v1689, 2147483648
        %v2011 = vxor.u32 %v1691, 2147483648
        %v2012 = vxor.u32 %v1882, 2147483648
        %v2013 = vxor.u32 %v1884, 2147483648
        %v2014 = vxor.u32 %v1693, 2147483648
        %v2015 = vxor.u32 %v1695, 2147483648
        %v2016 = vxor.u32 %v1886, 2147483648
        %v2017 = vxor.u32 %v1888, 2147483648
        %v2018 = vmul.f32 %v1890, 1.442695
        %v2019 = vpow.pop %v2018
        %v2020 = vmul.f32 %v1891, 1.442695
        %v2021 = vpow.pop %v2020
        %v2022 = vmul.f32 %v1892, 1.442695
        %v2023 = vpow.pop %v2022
        %v2024 = vmul.f32 %v1893, 1.442695
        %v2025 = vpow.pop %v2024
        %v2026 = vmul.f32 %v1894, 1.442695
        %v2027 = vpow.pop %v2026
        %v2028 = vmul.f32 %v1895, 1.442695
        %v2029 = vpow.pop %v2028
        %v2030 = vmul.f32 %v1896, 1.442695
        %v2031 = vpow.pop %v2030
        %v2032 = vmul.f32 %v1897, 1.442695
        %v2033 = vpow.pop %v2032
        %v2034 = vmul.f32 %v1898, 1.442695
        %v2035 = vpow.pop %v2034
        %v2036 = vmul.f32 %v1899, 1.442695
        %v2037 = vpow.pop %v2036
        %v2038 = vmul.f32 %v1900, 1.442695
        %v2039 = vpow.pop %v2038
        %v2040 = vmul.f32 %v1901, 1.442695
        %v2041 = vpow.pop %v2040
        %v2042 = vmul.f32 %v1902, 1.442695
        %v2043 = vpow.pop %v2042
        %v2044 = vmul.f32 %v1903, 1.442695
        %v2045 = vpow.pop %v2044
        %v2046 = vmul.f32 %v1904, 1.442695
        %v2047 = vpow.pop %v2046
        %v2048 = vmul.f32 %v1905, 1.442695
        %v2049 = vpow.pop %v2048
        %v2050 = vmul.f32 %v1906, 1.442695
        %v2051 = vpow.pop %v2050
        %v2052 = vmul.f32 %v1907, 1.442695
        %v2053 = vpow.pop %v2052
        %v2054 = vmul.f32 %v1908, 1.442695
        %v2055 = vpow.pop %v2054
        %v2056 = vmul.f32 %v1909, 1.442695
        %v2057 = vpow.pop %v2056
        %v2058 = vmul.f32 %v1910, 1.442695
        %v2059 = vpow.pop %v2058
        %v2060 = vmul.f32 %v1911, 1.442695
        %v2061 = vpow.pop %v2060
        %v2062 = vmul.f32 %v1912, 1.442695
        %v2063 = vpow.pop %v2062
        %v2064 = vmul.f32 %v1913, 1.442695
        %v2065 = vpow.pop %v2064
        %v2066 = vmul.f32 %v1914, 1.442695
        %v2067 = vpow.pop %v2066
        %v2068 = vmul.f32 %v1915, 1.442695
        %v2069 = vpow.pop %v2068
        %v2070 = vmul.f32 %v1916, 1.442695
        %v2071 = vpow.pop %v2070
        %v2072 = vmul.f32 %v1917, 1.442695
        %v2073 = vpow.pop %v2072
        %v2074 = vmul.f32 %v1918, 1.442695
        %v2075 = vpow.pop %v2074
        %v2076 = vmul.f32 %v1919, 1.442695
        %v2077 = vpow.pop %v2076
        %v2078 = vmul.f32 %v1920, 1.442695
        %v2079 = vpow.pop %v2078
        %v2080 = vmul.f32 %v1921, 1.442695
        %v2081 = vpow.pop %v2080
        %v2082 = vmul.f32 %v1922, 1.442695
        %v2083 = vpow.pop %v2082
        %v2084 = vmul.f32 %v1923, 1.442695
        %v2085 = vpow.pop %v2084
        %v2086 = vmul.f32 %v1924, 1.442695
        %v2087 = vpow.pop %v2086
        %v2088 = vmul.f32 %v1925, 1.442695
        %v2089 = vpow.pop %v2088
        %v2090 = vmul.f32 %v1926, 1.442695
        %v2091 = vpow.pop %v2090
        %v2092 = vmul.f32 %v1927, 1.442695
        %v2093 = vpow.pop %v2092
        %v2094 = vmul.f32 %v1928, 1.442695
        %v2095 = vpow.pop %v2094
        %v2096 = vmul.f32 %v1929, 1.442695
        %v2097 = vpow.pop %v2096
        %v2098 = vmul.f32 %v1930, 1.442695
        %v2099 = vpow.pop %v2098
        %v2100 = vmul.f32 %v1931, 1.442695
        %v2101 = vpow.pop %v2100
        %v2102 = vmul.f32 %v1932, 1.442695
        %v2103 = vpow.pop %v2102
        %v2104 = vmul.f32 %v1933, 1.442695
        %v2105 = vpow.pop %v2104
        %v2106 = vmul.f32 %v1934, 1.442695
        %v2107 = vpow.pop %v2106
        %v2108 = vmul.f32 %v1935, 1.442695
        %v2109 = vpow.pop %v2108
        %v2110 = vmul.f32 %v1936, 1.442695
        %v2111 = vpow.pop %v2110
        %v2112 = vmul.f32 %v1937, 1.442695
        %v2113 = vpow.pop %v2112
        %v2114 = vmul.f32 %v1938, 1.442695
        %v2115 = vpow.pop %v2114
        %v2116 = vmul.f32 %v1939, 1.442695
        %v2117 = vpow.pop %v2116
        %v2118 = vmul.f32 %v1940, 1.442695
        %v2119 = vpow.pop %v2118
        %v2120 = vmul.f32 %v1941, 1.442695
        %v2121 = vpow.pop %v2120
        %v2122 = vmul.f32 %v1942, 1.442695
        %v2123 = vpow.pop %v2122
        %v2124 = vmul.f32 %v1943, 1.442695
        %v2125 = vpow.pop %v2124
        %v2126 = vmul.f32 %v1944, 1.442695
        %v2127 = vpow.pop %v2126
        %v2128 = vmul.f32 %v1945, 1.442695
        %v2129 = vpow.pop %v2128
        %v2130 = vmul.f32 %v1946, 1.442695
        %v2131 = vpow.pop %v2130
        %v2132 = vmul.f32 %v1947, 1.442695
        %v2133 = vpow.pop %v2132
        %v2134 = vmul.f32 %v1948, 1.442695
        %v2135 = vpow.pop %v2134
        %v2136 = vmul.f32 %v1949, 1.442695
        %v2137 = vpow.pop %v2136
        %v2138 = vmul.f32 %v1950, 1.442695
        %v2139 = vpow.pop %v2138
        %v2140 = vmul.f32 %v1951, 1.442695
        %v2141 = vpow.pop %v2140
        %v2142 = vmul.f32 %v1952, 1.442695
        %v2143 = vpow.pop %v2142
        %v2144 = vmul.f32 %v1953, 1.442695
        %v2145 = vpow.pop %v2144
        %v2146 = vmul.f32 %v1954, 1.442695
        %v2147 = vpow.pop %v2146
        %v2148 = vmul.f32 %v1955, 1.442695
        %v2149 = vpow.pop %v2148
        %v2150 = vmul.f32 %v1956, 1.442695
        %v2151 = vpow.pop %v2150
        %v2152 = vmul.f32 %v1957, 1.442695
        %v2153 = vpow.pop %v2152
        %v2154 = vmul.f32 %v1958, 1.442695
        %v2155 = vpow.pop %v2154
        %v2156 = vmul.f32 %v1959, 1.442695
        %v2157 = vpow.pop %v2156
        %v2158 = vmul.f32 %v1960, 1.442695
        %v2159 = vpow.pop %v2158
        %v2160 = vmul.f32 %v1961, 1.442695
        %v2161 = vpow.pop %v2160
        %v2162 = vmul.f32 %v1962, 1.442695
        %v2163 = vpow.pop %v2162
        %v2164 = vmul.f32 %v1963, 1.442695
        %v2165 = vpow.pop %v2164
        %v2166 = vmul.f32 %v1964, 1.442695
        %v2167 = vpow.pop %v2166
        %v2168 = vmul.f32 %v1965, 1.442695
        %v2169 = vpow.pop %v2168
        %v2170 = vmul.f32 %v1966, 1.442695
        %v2171 = vpow.pop %v2170
        %v2172 = vmul.f32 %v1967, 1.442695
        %v2173 = vpow.pop %v2172
        %v2174 = vmul.f32 %v1968, 1.442695
        %v2175 = vpow.pop %v2174
        %v2176 = vmul.f32 %v1969, 1.442695
        %v2177 = vpow.pop %v2176
        %v2178 = vmul.f32 %v1970, 1.442695
        %v2179 = vpow.pop %v2178
        %v2180 = vmul.f32 %v1971, 1.442695
        %v2181 = vpow.pop %v2180
        %v2182 = vmul.f32 %v1972, 1.442695
        %v2183 = vpow.pop %v2182
        %v2184 = vmul.f32 %v1973, 1.442695
        %v2185 = vpow.pop %v2184
        %v2186 = vmul.f32 %v1974, 1.442695
        %v2187 = vpow.pop %v2186
        %v2188 = vmul.f32 %v1975, 1.442695
        %v2189 = vpow.pop %v2188
        %v2190 = vmul.f32 %v1976, 1.442695
        %v2191 = vpow.pop %v2190
        %v2192 = vmul.f32 %v1977, 1.442695
        %v2193 = vpow.pop %v2192
        %v2194 = vmul.f32 %v1978, 1.442695
        %v2195 = vpow.pop %v2194
        %v2196 = vmul.f32 %v1979, 1.442695
        %v2197 = vpow.pop %v2196
        %v2198 = vmul.f32 %v1980, 1.442695
        %v2199 = vpow.pop %v2198
        %v2200 = vmul.f32 %v1981, 1.442695
        %v2201 = vpow.pop %v2200
        %v2202 = vmul.f32 %v1982, 1.442695
        %v2203 = vpow.pop %v2202
        %v2204 = vmul.f32 %v1983, 1.442695
        %v2205 = vpow.pop %v2204
        %v2206 = vmul.f32 %v1984, 1.442695
        %v2207 = vpow.pop %v2206
        %v2208 = vmul.f32 %v1985, 1.442695
        %v2209 = vpow.pop %v2208
        %v2210 = vmul.f32 %v1986, 1.442695
        %v2211 = vpow.pop %v2210
        %v2212 = vmul.f32 %v1987, 1.442695
        %v2213 = vpow.pop %v2212
        %v2214 = vmul.f32 %v1988, 1.442695
        %v2215 = vpow.pop %v2214
        %v2216 = vmul.f32 %v1989, 1.442695
        %v2217 = vpow.pop %v2216
        %v2218 = vmul.f32 %v1990, 1.442695
        %v2219 = vpow.pop %v2218
        %v2220 = vmul.f32 %v1991, 1.442695
        %v2221 = vpow.pop %v2220
        %v2222 = vmul.f32 %v1992, 1.442695
        %v2223 = vpow.pop %v2222
        %v2224 = vmul.f32 %v1993, 1.442695
        %v2225 = vpow.pop %v2224
        %v2226 = vmul.f32 %v1994, 1.442695
        %v2227 = vpow.pop %v2226
        %v2228 = vmul.f32 %v1995, 1.442695
        %v2229 = vpow.pop %v2228
        %v2230 = vmul.f32 %v1996, 1.442695
        %v2231 = vpow.pop %v2230
        %v2232 = vmul.f32 %v1997, 1.442695
        %v2233 = vpow.pop %v2232
        %v2234 = vmul.f32 %v1998, 1.442695
        %v2235 = vpow.pop %v2234
        %v2236 = vmul.f32 %v1999, 1.442695
        %v2237 = vpow.pop %v2236
        %v2238 = vmul.f32 %v2000, 1.442695
        %v2239 = vpow.pop %v2238
        %v2240 = vmul.f32 %v2001, 1.442695
        %v2241 = vpow.pop %v2240
        %v2242 = vmul.f32 %v2002, 1.442695
        %v2243 = vpow.pop %v2242
        %v2244 = vmul.f32 %v2003, 1.442695
        %v2245 = vpow.pop %v2244
        %v2246 = vmul.f32 %v2004, 1.442695
        %v2247 = vpow.pop %v2246
        %v2248 = vmul.f32 %v2005, 1.442695
        %v2249 = vpow.pop %v2248
        %v2250 = vmul.f32 %v2006, 1.442695
        %v2251 = vpow.pop %v2250
        %v2252 = vmul.f32 %v2007, 1.442695
        %v2253 = vpow.pop %v2252
        %v2254 = vmul.f32 %v2008, 1.442695
        %v2255 = vpow.pop %v2254
        %v2256 = vmul.f32 %v2009, 1.442695
        %v2257 = vpow.pop %v2256
        %v2258 = vmul.f32 %v2010, 1.442695
        %v2259 = vpow.pop %v2258
        %v2260 = vmul.f32 %v2011, 1.442695
        %v2261 = vpow.pop %v2260
        %v2262 = vmul.f32 %v2012, 1.442695
        %v2263 = vpow.pop %v2262
        %v2264 = vmul.f32 %v2013, 1.442695
        %v2265 = vpow.pop %v2264
        %v2266 = vmul.f32 %v2014, 1.442695
        %v2267 = vpow.pop %v2266
        %v2268 = vmul.f32 %v2015, 1.442695
        %v2269 = vpow.pop %v2268
        %v2270 = vmul.f32 %v2016, 1.442695
        %v2271 = vpow.pop %v2270
        %v2272 = vmul.f32 %v2017, 1.442695
        %v2273 = vpow.pop %v2272
        %v2274 = vadd.f32 %v2019, 1.0
        %v2275 = vadd.f32 %v2021, 1.0
        %v2276 = vadd.f32 %v2023, 1.0
        %v2277 = vadd.f32 %v2025, 1.0
        %v2278 = vadd.f32 %v2027, 1.0
        %v2279 = vadd.f32 %v2029, 1.0
        %v2280 = vadd.f32 %v2031, 1.0
        %v2281 = vadd.f32 %v2033, 1.0
        %v2282 = vadd.f32 %v2035, 1.0
        %v2283 = vadd.f32 %v2037, 1.0
        %v2284 = vadd.f32 %v2039, 1.0
        %v2285 = vadd.f32 %v2041, 1.0
        %v2286 = vadd.f32 %v2043, 1.0
        %v2287 = vadd.f32 %v2045, 1.0
        %v2288 = vadd.f32 %v2047, 1.0
        %v2289 = vadd.f32 %v2049, 1.0
        %v2290 = vadd.f32 %v2051, 1.0
        %v2291 = vadd.f32 %v2053, 1.0
        %v2292 = vadd.f32 %v2055, 1.0
        %v2293 = vadd.f32 %v2057, 1.0
        %v2294 = vadd.f32 %v2059, 1.0
        %v2295 = vadd.f32 %v2061, 1.0
        %v2296 = vadd.f32 %v2063, 1.0
        %v2297 = vadd.f32 %v2065, 1.0
        %v2298 = vadd.f32 %v2067, 1.0
        %v2299 = vadd.f32 %v2069, 1.0
        %v2300 = vadd.f32 %v2071, 1.0
        %v2301 = vadd.f32 %v2073, 1.0
        %v2302 = vadd.f32 %v2075, 1.0
        %v2303 = vadd.f32 %v2077, 1.0
        %v2304 = vadd.f32 %v2079, 1.0
        %v2305 = vadd.f32 %v2081, 1.0
        %v2306 = vadd.f32 %v2083, 1.0
        %v2307 = vadd.f32 %v2085, 1.0
        %v2308 = vadd.f32 %v2087, 1.0
        %v2309 = vadd.f32 %v2089, 1.0
        %v2310 = vadd.f32 %v2091, 1.0
        %v2311 = vadd.f32 %v2093, 1.0
        %v2312 = vadd.f32 %v2095, 1.0
        %v2313 = vadd.f32 %v2097, 1.0
        %v2314 = vadd.f32 %v2099, 1.0
        %v2315 = vadd.f32 %v2101, 1.0
        %v2316 = vadd.f32 %v2103, 1.0
        %v2317 = vadd.f32 %v2105, 1.0
        %v2318 = vadd.f32 %v2107, 1.0
        %v2319 = vadd.f32 %v2109, 1.0
        %v2320 = vadd.f32 %v2111, 1.0
        %v2321 = vadd.f32 %v2113, 1.0
        %v2322 = vadd.f32 %v2115, 1.0
        %v2323 = vadd.f32 %v2117, 1.0
        %v2324 = vadd.f32 %v2119, 1.0
        %v2325 = vadd.f32 %v2121, 1.0
        %v2326 = vadd.f32 %v2123, 1.0
        %v2327 = vadd.f32 %v2125, 1.0
        %v2328 = vadd.f32 %v2127, 1.0
        %v2329 = vadd.f32 %v2129, 1.0
        %v2330 = vadd.f32 %v2131, 1.0
        %v2331 = vadd.f32 %v2133, 1.0
        %v2332 = vadd.f32 %v2135, 1.0
        %v2333 = vadd.f32 %v2137, 1.0
        %v2334 = vadd.f32 %v2139, 1.0
        %v2335 = vadd.f32 %v2141, 1.0
        %v2336 = vadd.f32 %v2143, 1.0
        %v2337 = vadd.f32 %v2145, 1.0
        %v2338 = vadd.f32 %v2147, 1.0
        %v2339 = vadd.f32 %v2149, 1.0
        %v2340 = vadd.f32 %v2151, 1.0
        %v2341 = vadd.f32 %v2153, 1.0
        %v2342 = vadd.f32 %v2155, 1.0
        %v2343 = vadd.f32 %v2157, 1.0
        %v2344 = vadd.f32 %v2159, 1.0
        %v2345 = vadd.f32 %v2161, 1.0
        %v2346 = vadd.f32 %v2163, 1.0
        %v2347 = vadd.f32 %v2165, 1.0
        %v2348 = vadd.f32 %v2167, 1.0
        %v2349 = vadd.f32 %v2169, 1.0
        %v2350 = vadd.f32 %v2171, 1.0
        %v2351 = vadd.f32 %v2173, 1.0
        %v2352 = vadd.f32 %v2175, 1.0
        %v2353 = vadd.f32 %v2177, 1.0
        %v2354 = vadd.f32 %v2179, 1.0
        %v2355 = vadd.f32 %v2181, 1.0
        %v2356 = vadd.f32 %v2183, 1.0
        %v2357 = vadd.f32 %v2185, 1.0
        %v2358 = vadd.f32 %v2187, 1.0
        %v2359 = vadd.f32 %v2189, 1.0
        %v2360 = vadd.f32 %v2191, 1.0
        %v2361 = vadd.f32 %v2193, 1.0
        %v2362 = vadd.f32 %v2195, 1.0
        %v2363 = vadd.f32 %v2197, 1.0
        %v2364 = vadd.f32 %v2199, 1.0
        %v2365 = vadd.f32 %v2201, 1.0
        %v2366 = vadd.f32 %v2203, 1.0
        %v2367 = vadd.f32 %v2205, 1.0
        %v2368 = vadd.f32 %v2207, 1.0
        %v2369 = vadd.f32 %v2209, 1.0
        %v2370 = vadd.f32 %v2211, 1.0
        %v2371 = vadd.f32 %v2213, 1.0
        %v2372 = vadd.f32 %v2215, 1.0
        %v2373 = vadd.f32 %v2217, 1.0
        %v2374 = vadd.f32 %v2219, 1.0
        %v2375 = vadd.f32 %v2221, 1.0
        %v2376 = vadd.f32 %v2223, 1.0
        %v2377 = vadd.f32 %v2225, 1.0
        %v2378 = vadd.f32 %v2227, 1.0
        %v2379 = vadd.f32 %v2229, 1.0
        %v2380 = vadd.f32 %v2231, 1.0
        %v2381 = vadd.f32 %v2233, 1.0
        %v2382 = vadd.f32 %v2235, 1.0
        %v2383 = vadd.f32 %v2237, 1.0
        %v2384 = vadd.f32 %v2239, 1.0
        %v2385 = vadd.f32 %v2241, 1.0
        %v2386 = vadd.f32 %v2243, 1.0
        %v2387 = vadd.f32 %v2245, 1.0
        %v2388 = vadd.f32 %v2247, 1.0
        %v2389 = vadd.f32 %v2249, 1.0
        %v2390 = vadd.f32 %v2251, 1.0
        %v2391 = vadd.f32 %v2253, 1.0
        %v2392 = vadd.f32 %v2255, 1.0
        %v2393 = vadd.f32 %v2257, 1.0
        %v2394 = vadd.f32 %v2259, 1.0
        %v2395 = vadd.f32 %v2261, 1.0
        %v2396 = vadd.f32 %v2263, 1.0
        %v2397 = vadd.f32 %v2265, 1.0
        %v2398 = vadd.f32 %v2267, 1.0
        %v2399 = vadd.f32 %v2269, 1.0
        %v2400 = vadd.f32 %v2271, 1.0
        %v2401 = vadd.f32 %v2273, 1.0
        %v2402 = vrcp.pop %v2274
        %v2403 = vmul.f32 1.0, %v2402
        %v2404 = vrcp.pop %v2275
        %v2405 = vmul.f32 1.0, %v2404
        %v2406 = vrcp.pop %v2276
        %v2407 = vmul.f32 1.0, %v2406
        %v2408 = vrcp.pop %v2277
        %v2409 = vmul.f32 1.0, %v2408
        %v2410 = vrcp.pop %v2278
        %v2411 = vmul.f32 1.0, %v2410
        %v2412 = vrcp.pop %v2279
        %v2413 = vmul.f32 1.0, %v2412
        %v2414 = vrcp.pop %v2280
        %v2415 = vmul.f32 1.0, %v2414
        %v2416 = vrcp.pop %v2281
        %v2417 = vmul.f32 1.0, %v2416
        %v2418 = vrcp.pop %v2282
        %v2419 = vmul.f32 1.0, %v2418
        %v2420 = vrcp.pop %v2283
        %v2421 = vmul.f32 1.0, %v2420
        %v2422 = vrcp.pop %v2284
        %v2423 = vmul.f32 1.0, %v2422
        %v2424 = vrcp.pop %v2285
        %v2425 = vmul.f32 1.0, %v2424
        %v2426 = vrcp.pop %v2286
        %v2427 = vmul.f32 1.0, %v2426
        %v2428 = vrcp.pop %v2287
        %v2429 = vmul.f32 1.0, %v2428
        %v2430 = vrcp.pop %v2288
        %v2431 = vmul.f32 1.0, %v2430
        %v2432 = vrcp.pop %v2289
        %v2433 = vmul.f32 1.0, %v2432
        %v2434 = vrcp.pop %v2290
        %v2435 = vmul.f32 1.0, %v2434
        %v2436 = vrcp.pop %v2291
        %v2437 = vmul.f32 1.0, %v2436
        %v2438 = vrcp.pop %v2292
        %v2439 = vmul.f32 1.0, %v2438
        %v2440 = vrcp.pop %v2293
        %v2441 = vmul.f32 1.0, %v2440
        %v2442 = vrcp.pop %v2294
        %v2443 = vmul.f32 1.0, %v2442
        %v2444 = vrcp.pop %v2295
        %v2445 = vmul.f32 1.0, %v2444
        %v2446 = vrcp.pop %v2296
        %v2447 = vmul.f32 1.0, %v2446
        %v2448 = vrcp.pop %v2297
        %v2449 = vmul.f32 1.0, %v2448
        %v2450 = vrcp.pop %v2298
        %v2451 = vmul.f32 1.0, %v2450
        %v2452 = vrcp.pop %v2299
        %v2453 = vmul.f32 1.0, %v2452
        %v2454 = vrcp.pop %v2300
        %v2455 = vmul.f32 1.0, %v2454
        %v2456 = vrcp.pop %v2301
        %v2457 = vmul.f32 1.0, %v2456
        %v2458 = vrcp.pop %v2302
        %v2459 = vmul.f32 1.0, %v2458
        %v2460 = vrcp.pop %v2303
        %v2461 = vmul.f32 1.0, %v2460
        %v2462 = vrcp.pop %v2304
        %v2463 = vmul.f32 1.0, %v2462
        %v2464 = vrcp.pop %v2305
        %v2465 = vmul.f32 1.0, %v2464
        %v2466 = vrcp.pop %v2306
        %v2467 = vmul.f32 1.0, %v2466
        %v2468 = vrcp.pop %v2307
        %v2469 = vmul.f32 1.0, %v2468
        %v2470 = vrcp.pop %v2308
        %v2471 = vmul.f32 1.0, %v2470
        %v2472 = vrcp.pop %v2309
        %v2473 = vmul.f32 1.0, %v2472
        %v2474 = vrcp.pop %v2310
        %v2475 = vmul.f32 1.0, %v2474
        %v2476 = vrcp.pop %v2311
        %v2477 = vmul.f32 1.0, %v2476
        %v2478 = vrcp.pop %v2312
        %v2479 = vmul.f32 1.0, %v2478
        %v2480 = vrcp.pop %v2313
        %v2481 = vmul.f32 1.0, %v2480
        %v2482 = vrcp.pop %v2314
        %v2483 = vmul.f32 1.0, %v2482
        %v2484 = vrcp.pop %v2315
        %v2485 = vmul.f32 1.0, %v2484
        %v2486 = vrcp.pop %v2316
        %v2487 = vmul.f32 1.0, %v2486
        %v2488 = vrcp.pop %v2317
        %v2489 = vmul.f32 1.0, %v2488
        %v2490 = vrcp.pop %v2318
        %v2491 = vmul.f32 1.0, %v2490
        %v2492 = vrcp.pop %v2319
        %v2493 = vmul.f32 1.0, %v2492
        %v2494 = vrcp.pop %v2320
        %v2495 = vmul.f32 1.0, %v2494
        %v2496 = vrcp.pop %v2321
        %v2497 = vmul.f32 1.0, %v2496
        %v2498 = vrcp.pop %v2322
        %v2499 = vmul.f32 1.0, %v2498
        %v2500 = vrcp.pop %v2323
        %v2501 = vmul.f32 1.0, %v2500
        %v2502 = vrcp.pop %v2324
        %v2503 = vmul.f32 1.0, %v2502
        %v2504 = vrcp.pop %v2325
        %v2505 = vmul.f32 1.0, %v2504
        %v2506 = vrcp.pop %v2326
        %v2507 = vmul.f32 1.0, %v2506
        %v2508 = vrcp.pop %v2327
        %v2509 = vmul.f32 1.0, %v2508
        %v2510 = vrcp.pop %v2328
        %v2511 = vmul.f32 1.0, %v2510
        %v2512 = vrcp.pop %v2329
        %v2513 = vmul.f32 1.0, %v2512
        %v2514 = vrcp.pop %v2330
        %v2515 = vmul.f32 1.0, %v2514
        %v2516 = vrcp.pop %v2331
        %v2517 = vmul.f32 1.0, %v2516
        %v2518 = vrcp.pop %v2332
        %v2519 = vmul.f32 1.0, %v2518
        %v2520 = vrcp.pop %v2333
        %v2521 = vmul.f32 1.0, %v2520
        %v2522 = vrcp.pop %v2334
        %v2523 = vmul.f32 1.0, %v2522
        %v2524 = vrcp.pop %v2335
        %v2525 = vmul.f32 1.0, %v2524
        %v2526 = vrcp.pop %v2336
        %v2527 = vmul.f32 1.0, %v2526
        %v2528 = vrcp.pop %v2337
        %v2529 = vmul.f32 1.0, %v2528
        %v2530 = vrcp.pop %v2338
        %v2531 = vmul.f32 1.0, %v2530
        %v2532 = vrcp.pop %v2339
        %v2533 = vmul.f32 1.0, %v2532
        %v2534 = vrcp.pop %v2340
        %v2535 = vmul.f32 1.0, %v2534
        %v2536 = vrcp.pop %v2341
        %v2537 = vmul.f32 1.0, %v2536
        %v2538 = vrcp.pop %v2342
        %v2539 = vmul.f32 1.0, %v2538
        %v2540 = vrcp.pop %v2343
        %v2541 = vmul.f32 1.0, %v2540
        %v2542 = vrcp.pop %v2344
        %v2543 = vmul.f32 1.0, %v2542
        %v2544 = vrcp.pop %v2345
        %v2545 = vmul.f32 1.0, %v2544
        %v2546 = vrcp.pop %v2346
        %v2547 = vmul.f32 1.0, %v2546
        %v2548 = vrcp.pop %v2347
        %v2549 = vmul.f32 1.0, %v2548
        %v2550 = vrcp.pop %v2348
        %v2551 = vmul.f32 1.0, %v2550
        %v2552 = vrcp.pop %v2349
        %v2553 = vmul.f32 1.0, %v2552
        %v2554 = vrcp.pop %v2350
        %v2555 = vmul.f32 1.0, %v2554
        %v2556 = vrcp.pop %v2351
        %v2557 = vmul.f32 1.0, %v2556
        %v2558 = vrcp.pop %v2352
        %v2559 = vmul.f32 1.0, %v2558
        %v2560 = vrcp.pop %v2353
        %v2561 = vmul.f32 1.0, %v2560
        %v2562 = vrcp.pop %v2354
        %v2563 = vmul.f32 1.0, %v2562
        %v2564 = vrcp.pop %v2355
        %v2565 = vmul.f32 1.0, %v2564
        %v2566 = vrcp.pop %v2356
        %v2567 = vmul.f32 1.0, %v2566
        %v2568 = vrcp.pop %v2357
        %v2569 = vmul.f32 1.0, %v2568
        %v2570 = vrcp.pop %v2358
        %v2571 = vmul.f32 1.0, %v2570
        %v2572 = vrcp.pop %v2359
        %v2573 = vmul.f32 1.0, %v2572
        %v2574 = vrcp.pop %v2360
        %v2575 = vmul.f32 1.0, %v2574
        %v2576 = vrcp.pop %v2361
        %v2577 = vmul.f32 1.0, %v2576
        %v2578 = vrcp.pop %v2362
        %v2579 = vmul.f32 1.0, %v2578
        %v2580 = vrcp.pop %v2363
        %v2581 = vmul.f32 1.0, %v2580
        %v2582 = vrcp.pop %v2364
        %v2583 = vmul.f32 1.0, %v2582
        %v2584 = vrcp.pop %v2365
        %v2585 = vmul.f32 1.0, %v2584
        %v2586 = vrcp.pop %v2366
        %v2587 = vmul.f32 1.0, %v2586
        %v2588 = vrcp.pop %v2367
        %v2589 = vmul.f32 1.0, %v2588
        %v2590 = vrcp.pop %v2368
        %v2591 = vmul.f32 1.0, %v2590
        %v2592 = vrcp.pop %v2369
        %v2593 = vmul.f32 1.0, %v2592
        %v2594 = vrcp.pop %v2370
        %v2595 = vmul.f32 1.0, %v2594
        %v2596 = vrcp.pop %v2371
        %v2597 = vmul.f32 1.0, %v2596
        %v2598 = vrcp.pop %v2372
        %v2599 = vmul.f32 1.0, %v2598
        %v2600 = vrcp.pop %v2373
        %v2601 = vmul.f32 1.0, %v2600
        %v2602 = vrcp.pop %v2374
        %v2603 = vmul.f32 1.0, %v2602
        %v2604 = vrcp.pop %v2375
        %v2605 = vmul.f32 1.0, %v2604
        %v2606 = vrcp.pop %v2376
        %v2607 = vmul.f32 1.0, %v2606
        %v2608 = vrcp.pop %v2377
        %v2609 = vmul.f32 1.0, %v2608
        %v2610 = vrcp.pop %v2378
        %v2611 = vmul.f32 1.0, %v2610
        %v2612 = vrcp.pop %v2379
        %v2613 = vmul.f32 1.0, %v2612
        %v2614 = vrcp.pop %v2380
        %v2615 = vmul.f32 1.0, %v2614
        %v2616 = vrcp.pop %v2381
        %v2617 = vmul.f32 1.0, %v2616
        %v2618 = vrcp.pop %v2382
        %v2619 = vmul.f32 1.0, %v2618
        %v2620 = vrcp.pop %v2383
        %v2621 = vmul.f32 1.0, %v2620
        %v2622 = vrcp.pop %v2384
        %v2623 = vmul.f32 1.0, %v2622
        %v2624 = vrcp.pop %v2385
        %v2625 = vmul.f32 1.0, %v2624
        %v2626 = vrcp.pop %v2386
        %v2627 = vmul.f32 1.0, %v2626
        %v2628 = vrcp.pop %v2387
        %v2629 = vmul.f32 1.0, %v2628
        %v2630 = vrcp.pop %v2388
        %v2631 = vmul.f32 1.0, %v2630
        %v2632 = vrcp.pop %v2389
        %v2633 = vmul.f32 1.0, %v2632
        %v2634 = vrcp.pop %v2390
        %v2635 = vmul.f32 1.0, %v2634
        %v2636 = vrcp.pop %v2391
        %v2637 = vmul.f32 1.0, %v2636
        %v2638 = vrcp.pop %v2392
        %v2639 = vmul.f32 1.0, %v2638
        %v2640 = vrcp.pop %v2393
        %v2641 = vmul.f32 1.0, %v2640
        %v2642 = vrcp.pop %v2394
        %v2643 = vmul.f32 1.0, %v2642
        %v2644 = vrcp.pop %v2395
        %v2645 = vmul.f32 1.0, %v2644
        %v2646 = vrcp.pop %v2396
        %v2647 = vmul.f32 1.0, %v2646
        %v2648 = vrcp.pop %v2397
        %v2649 = vmul.f32 1.0, %v2648
        %v2650 = vrcp.pop %v2398
        %v2651 = vmul.f32 1.0, %v2650
        %v2652 = vrcp.pop %v2399
        %v2653 = vmul.f32 1.0, %v2652
        %v2654 = vrcp.pop %v2400
        %v2655 = vmul.f32 1.0, %v2654
        %v2656 = vrcp.pop %v2401
        %v2657 = vmul.f32 1.0, %v2656
        %2658 = vst [vmem:[%s330] sm:$0xff] %v2403
        %2659 = vst [vmem:[%s330 + $0x8] sm:$0xff] %v2405
        %2660 = vst [vmem:[%s330 + $0x10] sm:$0xff] %v2411
        %2661 = vst [vmem:[%s330 + $0x18] sm:$0xff] %v2413
        %2662 = vst [vmem:[%s330 + $0x20] sm:$0xff] %v2419
        %2663 = vst [vmem:[%s330 + $0x28] sm:$0xff] %v2421
        %2664 = vst [vmem:[%s330 + $0x30] sm:$0xff] %v2427
        %2665 = vst [vmem:[%s330 + $0x38] sm:$0xff] %v2429
        %2666 = vst [vmem:[%s330 + $0x40] sm:$0xff] %v2435
        %2667 = vst [vmem:[%s330 + $0x48] sm:$0xff] %v2437
        %2668 = vst [vmem:[%s330 + $0x50] sm:$0xff] %v2443
        %2669 = vst [vmem:[%s330 + $0x58] sm:$0xff] %v2445
        %2670 = vst [vmem:[%s330 + $0x60] sm:$0xff] %v2451
        %2671 = vst [vmem:[%s330 + $0x68] sm:$0xff] %v2453
        %2672 = vst [vmem:[%s330 + $0x70] sm:$0xff] %v2459
        %2673 = vst [vmem:[%s330 + $0x78] sm:$0xff] %v2461
        %2674 = vst [vmem:[%s330 + $0x80] sm:$0xff] %v2467
        %2675 = vst [vmem:[%s330 + $0x88] sm:$0xff] %v2469
        %2676 = vst [vmem:[%s330 + $0x90] sm:$0xff] %v2475
        %2677 = vst [vmem:[%s330 + $0x98] sm:$0xff] %v2477
        %2678 = vst [vmem:[%s330 + $0xa0] sm:$0xff] %v2483
        %2679 = vst [vmem:[%s330 + $0xa8] sm:$0xff] %v2485
        %2680 = vst [vmem:[%s330 + $0xb0] sm:$0xff] %v2491
        %2681 = vst [vmem:[%s330 + $0xb8] sm:$0xff] %v2493
        %2682 = vst [vmem:[%s330 + $0xc0] sm:$0xff] %v2499
        %2683 = vst [vmem:[%s330 + $0xc8] sm:$0xff] %v2501
        %2684 = vst [vmem:[%s330 + $0xd0] sm:$0xff] %v2507
        %2685 = vst [vmem:[%s330 + $0xd8] sm:$0xff] %v2509
        %2686 = vst [vmem:[%s330 + $0xe0] sm:$0xff] %v2515
        %2687 = vst [vmem:[%s330 + $0xe8] sm:$0xff] %v2517
        %2688 = vst [vmem:[%s330 + $0xf0] sm:$0xff] %v2523
        %2689 = vst [vmem:[%s330 + $0xf8] sm:$0xff] %v2525
        %2690 = vst [vmem:[%s330 + $0x100] sm:$0xff] %v2531
        %2691 = vst [vmem:[%s330 + $0x108] sm:$0xff] %v2533
        %2692 = vst [vmem:[%s330 + $0x110] sm:$0xff] %v2539
        %2693 = vst [vmem:[%s330 + $0x118] sm:$0xff] %v2541
        %2694 = vst [vmem:[%s330 + $0x120] sm:$0xff] %v2547
        %2695 = vst [vmem:[%s330 + $0x128] sm:$0xff] %v2549
        %2696 = vst [vmem:[%s330 + $0x130] sm:$0xff] %v2555
        %2697 = vst [vmem:[%s330 + $0x138] sm:$0xff] %v2557
        %2698 = vst [vmem:[%s330 + $0x140] sm:$0xff] %v2563
        %2699 = vst [vmem:[%s330 + $0x148] sm:$0xff] %v2565
        %2700 = vst [vmem:[%s330 + $0x150] sm:$0xff] %v2571
        %2701 = vst [vmem:[%s330 + $0x158] sm:$0xff] %v2573
        %2702 = vst [vmem:[%s330 + $0x160] sm:$0xff] %v2579
        %2703 = vst [vmem:[%s330 + $0x168] sm:$0xff] %v2581
        %2704 = vst [vmem:[%s330 + $0x170] sm:$0xff] %v2587
        %2705 = vst [vmem:[%s330 + $0x178] sm:$0xff] %v2589
        %2706 = vst [vmem:[%s330 + $0x180] sm:$0xff] %v2595
        %2707 = vst [vmem:[%s330 + $0x188] sm:$0xff] %v2597
        %2708 = vst [vmem:[%s330 + $0x190] sm:$0xff] %v2603
        %2709 = vst [vmem:[%s330 + $0x198] sm:$0xff] %v2605
        %2710 = vst [vmem:[%s330 + $0x1a0] sm:$0xff] %v2611
        %2711 = vst [vmem:[%s330 + $0x1a8] sm:$0xff] %v2613
        %2712 = vst [vmem:[%s330 + $0x1b0] sm:$0xff] %v2619
        %2713 = vst [vmem:[%s330 + $0x1b8] sm:$0xff] %v2621
        %2714 = vst [vmem:[%s330 + $0x1c0] sm:$0xff] %v2627
        %2715 = vst [vmem:[%s330 + $0x1c8] sm:$0xff] %v2629
        %2716 = vst [vmem:[%s330 + $0x1d0] sm:$0xff] %v2635
        %2717 = vst [vmem:[%s330 + $0x1d8] sm:$0xff] %v2637
        %2718 = vst [vmem:[%s330 + $0x1e0] sm:$0xff] %v2643
        %2719 = vst [vmem:[%s330 + $0x1e8] sm:$0xff] %v2645
        %2720 = vst [vmem:[%s330 + $0x1f0] sm:$0xff] %v2651
        %2721 = vst [vmem:[%s330 + $0x1f8] sm:$0xff] %v2653
        %2722 = vst [vmem:[%s337] sm:$0xff] %v2407
        %2723 = vst [vmem:[%s337 + $0x8] sm:$0xff] %v2409
        %2724 = vst [vmem:[%s337 + $0x10] sm:$0xff] %v2415
        %2725 = vst [vmem:[%s337 + $0x18] sm:$0xff] %v2417
        %2726 = vst [vmem:[%s337 + $0x20] sm:$0xff] %v2423
        %2727 = vst [vmem:[%s337 + $0x28] sm:$0xff] %v2425
        %2728 = vst [vmem:[%s337 + $0x30] sm:$0xff] %v2431
        %2729 = vst [vmem:[%s337 + $0x38] sm:$0xff] %v2433
        %2730 = vst [vmem:[%s337 + $0x40] sm:$0xff] %v2439
        %2731 = vst [vmem:[%s337 + $0x48] sm:$0xff] %v2441
        %2732 = vst [vmem:[%s337 + $0x50] sm:$0xff] %v2447
        %2733 = vst [vmem:[%s337 + $0x58] sm:$0xff] %v2449
        %2734 = vst [vmem:[%s337 + $0x60] sm:$0xff] %v2455
        %2735 = vst [vmem:[%s337 + $0x68] sm:$0xff] %v2457
        %2736 = vst [vmem:[%s337 + $0x70] sm:$0xff] %v2463
        %2737 = vst [vmem:[%s337 + $0x78] sm:$0xff] %v2465
        %2738 = vst [vmem:[%s337 + $0x80] sm:$0xff] %v2471
        %2739 = vst [vmem:[%s337 + $0x88] sm:$0xff] %v2473
        %2740 = vst [vmem:[%s337 + $0x90] sm:$0xff] %v2479
        %2741 = vst [vmem:[%s337 + $0x98] sm:$0xff] %v2481
        %2742 = vst [vmem:[%s337 + $0xa0] sm:$0xff] %v2487
        %2743 = vst [vmem:[%s337 + $0xa8] sm:$0xff] %v2489
        %2744 = vst [vmem:[%s337 + $0xb0] sm:$0xff] %v2495
        %2745 = vst [vmem:[%s337 + $0xb8] sm:$0xff] %v2497
        %2746 = vst [vmem:[%s337 + $0xc0] sm:$0xff] %v2503
        %2747 = vst [vmem:[%s337 + $0xc8] sm:$0xff] %v2505
        %2748 = vst [vmem:[%s337 + $0xd0] sm:$0xff] %v2511
        %2749 = vst [vmem:[%s337 + $0xd8] sm:$0xff] %v2513
        %2750 = vst [vmem:[%s337 + $0xe0] sm:$0xff] %v2519
        %2751 = vst [vmem:[%s337 + $0xe8] sm:$0xff] %v2521
        %2752 = vst [vmem:[%s337 + $0xf0] sm:$0xff] %v2527
        %2753 = vst [vmem:[%s337 + $0xf8] sm:$0xff] %v2529
        %2754 = vst [vmem:[%s337 + $0x100] sm:$0xff] %v2535
        %2755 = vst [vmem:[%s337 + $0x108] sm:$0xff] %v2537
        %2756 = vst [vmem:[%s337 + $0x110] sm:$0xff] %v2543
        %2757 = vst [vmem:[%s337 + $0x118] sm:$0xff] %v2545
        %2758 = vst [vmem:[%s337 + $0x120] sm:$0xff] %v2551
        %2759 = vst [vmem:[%s337 + $0x128] sm:$0xff] %v2553
        %2760 = vst [vmem:[%s337 + $0x130] sm:$0xff] %v2559
        %2761 = vst [vmem:[%s337 + $0x138] sm:$0xff] %v2561
        %2762 = vst [vmem:[%s337 + $0x140] sm:$0xff] %v2567
        %2763 = vst [vmem:[%s337 + $0x148] sm:$0xff] %v2569
        %2764 = vst [vmem:[%s337 + $0x150] sm:$0xff] %v2575
        %2765 = vst [vmem:[%s337 + $0x158] sm:$0xff] %v2577
        %2766 = vst [vmem:[%s337 + $0x160] sm:$0xff] %v2583
        %2767 = vst [vmem:[%s337 + $0x168] sm:$0xff] %v2585
        %2768 = vst [vmem:[%s337 + $0x170] sm:$0xff] %v2591
        %2769 = vst [vmem:[%s337 + $0x178] sm:$0xff] %v2593
        %2770 = vst [vmem:[%s337 + $0x180] sm:$0xff] %v2599
        %2771 = vst [vmem:[%s337 + $0x188] sm:$0xff] %v2601
        %2772 = vst [vmem:[%s337 + $0x190] sm:$0xff] %v2607
        %2773 = vst [vmem:[%s337 + $0x198] sm:$0xff] %v2609
        %2774 = vst [vmem:[%s337 + $0x1a0] sm:$0xff] %v2615
        %2775 = vst [vmem:[%s337 + $0x1a8] sm:$0xff] %v2617
        %2776 = vst [vmem:[%s337 + $0x1b0] sm:$0xff] %v2623
        %2777 = vst [vmem:[%s337 + $0x1b8] sm:$0xff] %v2625
        %2778 = vst [vmem:[%s337 + $0x1c0] sm:$0xff] %v2631
        %2779 = vst [vmem:[%s337 + $0x1c8] sm:$0xff] %v2633
        %2780 = vst [vmem:[%s337 + $0x1d0] sm:$0xff] %v2639
        %2781 = vst [vmem:[%s337 + $0x1d8] sm:$0xff] %v2641
        %2782 = vst [vmem:[%s337 + $0x1e0] sm:$0xff] %v2647
        %2783 = vst [vmem:[%s337 + $0x1e8] sm:$0xff] %v2649
        %2784 = vst [vmem:[%s337 + $0x1f0] sm:$0xff] %v2655
        %2785 = vst [vmem:[%s337 + $0x1f8] sm:$0xff] %v2657
        %s2786 = sand.u32 %s147, 1
        %s2787 = scalar_lea.sflag [#allocation4], %s2786
        %s2788 = sand.u32 %s147, 1
        %s2789 = smul.addr %s2788, 512
        %s2790 = scalar_lea.vmem [#allocation8], %s2789
        %s2791 = sand.u32 %s29, 1
        %s2792 = scalar_lea.sflag [#allocation10], %s2791
        %s2793 = sand.u32 %s173, 1
        %s2794 = smul.addr %s2793, 512
        %s2795 = scalar_lea.vmem [#allocation9], %s2794
        %s2796 = sand.u32 %s29, 1
        %s2797 = scalar_lea.sflag [#allocation10], %s2796
        %s2798 = sand.u32 %s199, 1
        %s2799 = smul.addr %s2798, 512
        %s2800 = scalar_lea.vmem [#allocation11], %s2799
        // Predicated region
        $region53: #{tpu_custom_call.1} parent=39 // pred_check
          %p2801 = pneg %p157
        $region54: #{tpu_custom_call.1} parent=39 // pred_check_branch
          %2803 = sbr.rel (%p2801) target = $region56
        $region55: #{tpu_custom_call.1} parent=39 // pred_region
          %s2804 = smul.u32 32, %s29
          %s2806 = ssub.s32 8192, 8192
          %2807 = vsyncadd %s2787, %s2806
          %s2808 = smul.addr %s2804, 2
          %s2809 = smul.addr %s2808, 128
          %s2810 = scalar_lea.hbm %s5, %s2809
          %s2811 = sshll.u32 %s2790, 4
          %s2812 = int_to_ptr.vmem [resolvable:$true] %s2811
          %2817 = dma.vmem_to_hbm [thread:$0]  %s2812, 8192, %s2810, %s2787, 256, 256, 16
        $region56: #{tpu_custom_call.1} parent=39 // pred_fallthru
          _
        // Predicated region
        $region57: #{tpu_custom_call.1} parent=39 // pred_check
          %p2818 = pneg %p183
        $region58: #{tpu_custom_call.1} parent=39 // pred_check_branch
          %2820 = sbr.rel (%p2818) target = $region60
        $region59: #{tpu_custom_call.1} parent=39 // pred_region
          %s2821 = smul.u32 32, %s29
          %s2823 = ssub.s32 8192, 8192
          %2824 = vsyncadd %s2792, %s2823
          %s2825 = smul.addr %s2821, 2
          %s2826 = smul.addr %s2825, 128
          %s2827 = scalar_lea.hbm %s6, %s2826
          %s2828 = sshll.u32 %s2795, 4
          %s2829 = int_to_ptr.vmem [resolvable:$true] %s2828
          %2834 = dma.vmem_to_hbm [thread:$0]  %s2829, 8192, %s2827, %s2792, 256, 256, 16
        $region60: #{tpu_custom_call.1} parent=39 // pred_fallthru
          _
        // Predicated region
        $region61: #{tpu_custom_call.1} parent=39 // pred_check
          %p2835 = pneg %p209
        $region62: #{tpu_custom_call.1} parent=39 // pred_check_branch
          %2837 = sbr.rel (%p2835) target = $region64
        $region63: #{tpu_custom_call.1} parent=39 // pred_region
          %s2838 = smul.u32 32, %s29
          %s2840 = ssub.s32 8192, 8192
          %2841 = vsyncadd %s2797, %s2840
          %s2842 = smul.addr %s2838, 2
          %s2843 = smul.addr %s2842, 128
          %s2844 = scalar_lea.hbm %s7, %s2843
          %s2845 = sshll.u32 %s2800, 4
          %s2846 = int_to_ptr.vmem [resolvable:$true] %s2845
          %2851 = dma.vmem_to_hbm [thread:$0]  %s2846, 8192, %s2844, %s2797, 256, 256, 16
        $region64: #{tpu_custom_call.1} parent=39 // pred_fallthru
          _
      $region40: #{tpu_custom_call.1} parent=5 // pred_fallthru
        _
      %p2852 = scmp.le.s32.totalorder 2, %s24
      // Predicated region
      $region65: #{tpu_custom_call.1} parent=5 // pred_check
        %p2853 = pneg %p2852
      $region66: #{tpu_custom_call.1} parent=5 // pred_check_branch
        %2855 = sbr.rel (%p2853) target = $region68
      $region67: #{tpu_custom_call.1} parent=5 // pred_region
        %s2856 = ssub.s32 %s24, 2
        // Predicated region
        $region69: #{tpu_custom_call.1} parent=67 // pred_check
          %p2857 = pneg %p163
        $region70: #{tpu_custom_call.1} parent=67 // pred_check_branch
          %2859 = sbr.rel (%p2857) target = $region72
        $region71: #{tpu_custom_call.1} parent=67 // pred_region
          %s2860 = sand.u32 %s148, 1
          %s2861 = scalar_lea.sflag [#allocation4], %s2860
          %s2862 = sand.u32 %s148, 1
          %s2863 = smul.addr %s2862, 512
          %s2864 = scalar_lea.vmem [#allocation8], %s2863
          %2865 = dma.done %s2861, 8192
        $region72: #{tpu_custom_call.1} parent=67 // pred_fallthru
          _
        // Predicated region
        $region73: #{tpu_custom_call.1} parent=67 // pred_check
          %p2866 = pneg %p189
        $region74: #{tpu_custom_call.1} parent=67 // pred_check_branch
          %2868 = sbr.rel (%p2866) target = $region76
        $region75: #{tpu_custom_call.1} parent=67 // pred_region
          %s2869 = sand.u32 %s30, 1
          %s2870 = scalar_lea.sflag [#allocation10], %s2869
          %s2871 = sand.u32 %s174, 1
          %s2872 = smul.addr %s2871, 512
          %s2873 = scalar_lea.vmem [#allocation9], %s2872
          %2874 = dma.done %s2870, 8192
        $region76: #{tpu_custom_call.1} parent=67 // pred_fallthru
          _
        // Predicated region
        $region77: #{tpu_custom_call.1} parent=67 // pred_check
          %p2875 = pneg %p215
        $region78: #{tpu_custom_call.1} parent=67 // pred_check_branch
          %2877 = sbr.rel (%p2875) target = $region80
        $region79: #{tpu_custom_call.1} parent=67 // pred_region
          %s2878 = sand.u32 %s30, 1
          %s2879 = scalar_lea.sflag [#allocation10], %s2878
          %s2880 = sand.u32 %s200, 1
          %s2881 = smul.addr %s2880, 512
          %s2882 = scalar_lea.vmem [#allocation11], %s2881
          %2883 = dma.done %s2879, 8192
        $region80: #{tpu_custom_call.1} parent=67 // pred_fallthru
          _
      $region68: #{tpu_custom_call.1} parent=5 // pred_fallthru
        _
    $region6: #{tpu_custom_call.1} parent=1 // loop_footer
      %s28 = sadd.s32 1, %s24
    $region7: #{tpu_custom_call.1} parent=1 // loop_footer_branch
      %23 = sbr.rel target = $region3
    $region8: #{tpu_custom_call.1} parent=1 // loop_exit
      _
    %2884 = vsyncpa [#allocation3], 1
    %s2885 = scalar_lea.sflag [#allocation3], 1
    %2886 = vsyncpa %s2885, 1
    %2887 = vsyncpa [#allocation6], 1
    %2888 = vsyncpa [#allocation4], 1
    %s2889 = scalar_lea.sflag [#allocation4], 1
    %2890 = vsyncpa %s2889, 1
    %2891 = vsyncpa [#allocation10], 1
    %s2892 = scalar_lea.sflag [#allocation10], 1
    %2893 = vsyncpa %s2892, 1

</llo_original>
